<compile_context>
chip_gen: v7x
topology: tpu7x:2x2x1
jax: 0.10.0
libtpu: 0.0.40
codegen_flags: <defaults>
</compile_context>

<pallas_src>
import functools

import jax
import jax.numpy as jnp
from jax.experimental import pallas as pl
from jax.experimental.pallas import tpu as pltpu


def _basic_block_kernel(x_ref, w1_ref, b1_ref, w2_ref, b2_ref, o_ref,
                        img_ref, patch_ref, *, N, H, W, cin, c1, cpad):
    """Fused BasicBlock forward; the whole batch is handled in one grid step.

    x_ref    : (N, Cin, H*W)        images, channels on sublanes, HW lane-dense
    w1_ref   : (C1, 9*cpad)         conv1 weights (BN1 scale folded, chan-padded)
    b1_ref   : (C1, 1)              folded BN1 bias
    w2_ref   : (Cres, 9*cpad)       S @ (BN2-folded conv2 weights): scatter folded
    b2_ref   : (Cres, 1)            S @ b2 + bn_value
    o_ref    : (N, Cres, H*W)       relu(residual) output
    img_ref  : (cpad, N*(H*W+2M))   zero-margined conv input, one slab per image
    patch_ref: (9*cpad, N*H*W)      im2col patches (tap-major, 8-aligned slots)
    """
    f32 = jnp.float32
    HW = H * W
    M = W + 1                       # max |tap shift| = W + 1 -> per-image margin
    slab = HW + 2 * M               # per-image width inside img_ref

    # Column-only boundary masks; zero margins absorb all row (dy) overflow.
    col = jax.lax.broadcasted_iota(jnp.int32, (1, HW), 1) % W
    mask_l = (col >= 1).astype(f32)          # dx = -1 taps
    mask_r = (col <= W - 2).astype(f32)      # dx = +1 taps

    taps = []
    for ky in range(3):
        for kx in range(3):
            dy, dx = ky - 1, kx - 1
            mask = None if dx == 0 else (mask_l if dx < 0 else mask_r)
            taps.append((dy * W + dx, mask))

    # One-time zeroing: per-image margins + the channel-pad rows that neither
    # conv overwrites (they would otherwise be uninitialized VMEM feeding the
    # MXU; stale-but-finite rows are fine since their weight columns are zero).
    # Not gated on program_id: scratch must be valid on every core.
    cmin = min(cin, c1)
    zmarg = jnp.zeros((cpad, M), f32)
    for i in range(N):
        base = i * slab
        img_ref[:, base:base + M] = zmarg
        img_ref[:, base + M + HW:base + slab] = zmarg
        if cmin < cpad:
            img_ref[cmin:cpad, base + M:base + M + HW] = jnp.zeros(
                (cpad - cmin, HW), f32)

    def conv3x3(hs, w_ref_, b_ref_, c_in):
        # hs: list of per-image (c_in, HW) activations -> (Cout, N*HW) output
        # of the folded-BN 3x3 "same" conv as ONE MXU contraction.
        for i in range(N):
            start = i * slab + M
            img_ref[0:c_in, start:start + HW] = hs[i]
        for t, (shift, mask) in enumerate(taps):
            for i in range(N):
                start = i * slab + M + shift
                win = img_ref[:, start:start + HW]       # full 8-sublane slot
                if mask is not None:
                    win = win * mask
                patch_ref[t * cpad:(t + 1) * cpad, i * HW:(i + 1) * HW] = win
        return jnp.dot(w_ref_[...], patch_ref[...],
                       preferred_element_type=f32) + b_ref_[...]

    xs = [x_ref[i].astype(f32) for i in range(N)]                  # (Cin, HW)
    h1 = jnp.maximum(conv3x3(xs, w1_ref, b1_ref, cin), 0.0)        # (C1, N*HW)
    out2 = conv3x3([h1[:, i * HW:(i + 1) * HW] for i in range(N)],
                   w2_ref, b2_ref, c1)                             # (Cres, N*HW)

    # residual = relu(x + bn_value + index_add_(out)); bn_value and the scatter
    # are already folded into w2/b2, so out2 is the complete additive term.
    for i in range(N):
        o_ref[i] = jnp.maximum(xs[i] + out2[:, i * HW:(i + 1) * HW],
                               0.0).astype(o_ref.dtype)


def fold_bn(gamma, beta, mean, var, eps=1e-5):
    """nn.BatchNorm2d (eval mode) -> per-channel (scale, bias).
    NOTE: eps must match the source BatchNorm2d's eps."""
    scale = gamma / jnp.sqrt(var + eps)
    return scale, beta - mean * scale


def _pack_conv_bn(w_oihw, scale, bias, cpad):
    """Fold BN scale into conv weights, zero-pad input channels to cpad and
    flatten taps tap-major / channel-minor -> (Cout, 9*cpad)."""
    cout, cin = w_oihw.shape[0], w_oihw.shape[1]
    w = jnp.transpose(w_oihw, (0, 2, 3, 1)) * scale[:, None, None, None]
    w = jnp.pad(w, ((0, 0), (0, 0), (0, 0), (0, cpad - cin)))
    return (w.reshape(cout, 9 * cpad).astype(jnp.float32),
            bias.reshape(cout, 1).astype(jnp.float32))


def basic_block_forward(x_nchw, p):
    N, Cin, H, W = x_nchw.shape
    HW = H * W
    if p["stride"] != 1:
        # TODO(synk): stride > 1 requires the (unmodeled) downsample branch;
        # the residual / index_add_ shapes are only consistent for stride == 1.
        raise NotImplementedError("stride != 1 (downsample path) is not modeled")

    C1, C2 = p["w1"].shape[0], p["w2"].shape[0]
    Cres = Cin                                 # downsample is None -> residual = x
    index = tuple(int(i) for i in p["index"])
    assert len(index) == C2, "index length must equal conv2 out-channels"
    assert all(0 <= i < Cres for i in index), "index value out of range"
    cpad = ((max(Cin, C1) + 7) // 8) * 8       # 8-sublane-aligned im2col slots

    w1m, b1v = _pack_conv_bn(p["w1"], p["s1"], p["b1"], cpad)
    w2m, b2v = _pack_conv_bn(p["w2"], p["s2"], p["b2"], cpad)
    # Fold the static index_add_ scatter (duplicate indices accumulate) and
    # bn_value into conv2's weights/bias -> conv2 emits residual-channel space.
    scat = jnp.zeros((Cres, C2), jnp.float32)
    scat = scat.at[jnp.asarray(index, jnp.int32), jnp.arange(C2)].add(1.0)
    w2m = scat @ w2m                                            # (Cres, 9*cpad)
    b2v = scat @ b2v + jnp.asarray(p["bn_value"], jnp.float32).reshape(Cres, 1)

    x_flat = x_nchw.reshape(N, Cin, HW)        # free reshape (contiguous dims)
    slab = HW + 2 * (W + 1)

    kern = functools.partial(_basic_block_kernel, N=N, H=H, W=W,
                             cin=Cin, c1=C1, cpad=cpad)
    out = pl.pallas_call(
        kern,
        out_shape=jax.ShapeDtypeStruct((N, Cres, HW), x_nchw.dtype),
        grid=(1,),                             # whole batch in one step
        in_specs=[
            pl.BlockSpec((N, Cin, HW), lambda n: (0, 0, 0)),
            pl.BlockSpec((C1, 9 * cpad), lambda n: (0, 0)),
            pl.BlockSpec((C1, 1), lambda n: (0, 0)),
            pl.BlockSpec((Cres, 9 * cpad), lambda n: (0, 0)),
            pl.BlockSpec((Cres, 1), lambda n: (0, 0)),
        ],
        out_specs=pl.BlockSpec((N, Cres, HW), lambda n: (0, 0, 0)),
        scratch_shapes=[
            pltpu.VMEM((cpad, N * slab), jnp.float32),     # zero-margined images
            pltpu.VMEM((9 * cpad, N * HW), jnp.float32),   # im2col patches
        ],
        compiler_params=pltpu.CompilerParams(dimension_semantics=("arbitrary",)),
    )(x_flat, w1m, b1v, w2m, b2v)
    return out.reshape(N, Cres, H, W)


# ---------------------------------------------------------------------------
# Pure-JAX reference (correctness check only)
# ---------------------------------------------------------------------------
def ref_forward(x_nchw, p):
    def conv(inp, w, stride):
        return jax.lax.conv_general_dilated(
            inp, w, window_strides=(stride, stride), padding=((1, 1), (1, 1)),
            dimension_numbers=("NCHW", "OIHW", "NCHW"))

    out = conv(x_nchw, p["w1"], p["stride"])
    out = out * p["s1"][None, :, None, None] + p["b1"][None, :, None, None]
    out = jnp.maximum(out, 0.0)
    out = conv(out, p["w2"], 1)
    out = out * p["s2"][None, :, None, None] + p["b2"][None, :, None, None]
    res = x_nchw + p["bn_value"][None, :, None, None]
    idx = jnp.asarray(p["index"], jnp.int32)
    res = res.at[:, idx, :, :].add(out)                  # index_add_ semantics
    return jnp.maximum(res, 0.0)


if __name__ == "__main__":
    key = jax.random.PRNGKey(0)
    N, Cin, H, W = 2, 4, 16, 16      # x: NCHW, inplanes=4
    C1, C2 = 3, 3                    # pruned widths num_for_construct['..1'/'..2']
    Cres = Cin                       # planes_before_prune (residual channels)
    stride = 1

    ks = jax.random.split(key, 12)
    w1 = jax.random.normal(ks[0], (C1, Cin, 3, 3), jnp.float32) * 0.2   # OIHW
    w2 = jax.random.normal(ks[1], (C2, C1, 3, 3), jnp.float32) * 0.2
    g1 = 1.0 + 0.1 * jax.random.normal(ks[2], (C1,), jnp.float32)
    be1 = 0.1 * jax.random.normal(ks[3], (C1,), jnp.float32)
    m1 = 0.1 * jax.random.normal(ks[4], (C1,), jnp.float32)
    v1 = jax.random.uniform(ks[5], (C1,), jnp.float32, minval=0.5, maxval=1.5)
    g2 = 1.0 + 0.1 * jax.random.normal(ks[6], (C2,), jnp.float32)
    be2 = 0.1 * jax.random.normal(ks[7], (C2,), jnp.float32)
    m2 = 0.1 * jax.random.normal(ks[8], (C2,), jnp.float32)
    v2 = jax.random.uniform(ks[9], (C2,), jnp.float32, minval=0.5, maxval=1.5)
    s1, b1 = fold_bn(g1, be1, m1, v1)
    s2, b2 = fold_bn(g2, be2, m2, v2)

    # index for residual.index_add_(1, index, out): length C2, values in [0, Cres)
    index = [0, 2, 3]
    # bn_value added to the residual (per-channel, broadcast like (1,C,1,1))
    bn_value = 0.05 * jax.random.normal(ks[10], (Cres,), jnp.float32)

    params = dict(w1=w1, s1=s1, b1=b1, w2=w2, s2=s2, b2=b2,
                  index=index, bn_value=bn_value, stride=stride)

    x = jax.random.normal(ks[11], (N, Cin, H, W), jnp.float32)

    y = jax.block_until_ready(basic_block_forward(x, params))
    y_ref = ref_forward(x, params)

    assert y.shape == (N, Cres, H, W)
    assert jnp.allclose(y, y_ref, atol=1e-4, rtol=1e-4)
    print("KERNEL_OK")
</pallas_src>

<mosaic_0001>
module attributes {stable_mosaic.version = 11 : i64} {
  func.func @_basic_block_kernel(%arg0: i32, %arg1: memref<2x4x256xf32, #tpu.memory_space<vmem>>, %arg2: memref<3x72xf32, #tpu.memory_space<vmem>>, %arg3: memref<3x1xf32, #tpu.memory_space<vmem>>, %arg4: memref<4x72xf32, #tpu.memory_space<vmem>>, %arg5: memref<4x1xf32, #tpu.memory_space<vmem>>, %arg6: memref<2x4x256xf32, #tpu.memory_space<vmem>>, %arg7: memref<8x580xf32, #tpu.memory_space<vmem>>, %arg8: memref<72x512xf32, #tpu.memory_space<vmem>>) attributes {dimension_semantics = [#tpu.dimension_semantics<arbitrary>], iteration_bounds = array<i64: 1>, scalar_prefetch = 0 : i64, scratch_operands = 2 : i64, tpu.core_type = #tpu.core_type<tc>, window_params = [{pipeline_mode = #tpu.pipeline_mode<synchronous>, transform_indices = @transform_0, window_bounds = array<i64: 2, 4, 256>}, {pipeline_mode = #tpu.pipeline_mode<synchronous>, transform_indices = @transform_1, window_bounds = array<i64: 3, 72>}, {pipeline_mode = #tpu.pipeline_mode<synchronous>, transform_indices = @transform_2, window_bounds = array<i64: 3, 1>}, {pipeline_mode = #tpu.pipeline_mode<synchronous>, transform_indices = @transform_3, window_bounds = array<i64: 4, 72>}, {pipeline_mode = #tpu.pipeline_mode<synchronous>, transform_indices = @transform_4, window_bounds = array<i64: 4, 1>}, {pipeline_mode = #tpu.pipeline_mode<synchronous>, transform_indices = @transform_5, window_bounds = array<i64: 2, 4, 256>}]} {
    %0 = tpu.iota {dimensions = array<i32: 1>} : vector<1x256xi32>
    %c16_i32 = arith.constant 16 : i32
    %c0_i32 = arith.constant 0 : i32
    %1 = arith.cmpi eq, %c16_i32, %c0_i32 : i32
    %c1_i32 = arith.constant 1 : i32
    %2 = arith.select %1, %c1_i32, %c16_i32 : i32
    %3 = vector.broadcast %2 : i32 to vector<1x256xi32>
    %4 = arith.remsi %0, %3 : vector<1x256xi32>
    %c0_i32_0 = arith.constant 0 : i32
    %5 = vector.broadcast %c0_i32_0 : i32 to vector<1x256xi32>
    %6 = arith.cmpi ne, %4, %5 : vector<1x256xi32>
    %c0_i32_1 = arith.constant 0 : i32
    %7 = vector.broadcast %c0_i32_1 : i32 to vector<1x256xi32>
    %8 = arith.cmpi slt, %4, %7 : vector<1x256xi32>
    %c0_i32_2 = arith.constant 0 : i32
    %9 = arith.cmpi slt, %2, %c0_i32_2 : i32
    %10 = vector.broadcast %9 : i1 to vector<1x256xi1>
    %11 = vector.broadcast %10 : vector<1x256xi1> to vector<1x256xi1>
    %12 = arith.xori %8, %11 : vector<1x256xi1>
    %13 = arith.andi %12, %6 : vector<1x256xi1>
    %14 = vector.broadcast %2 : i32 to vector<1x256xi32>
    %15 = arith.addi %4, %14 : vector<1x256xi32>
    %16 = arith.select %13, %15, %4 : vector<1x256xi1>, vector<1x256xi32>
    %c1_i32_3 = arith.constant 1 : i32
    %17 = vector.broadcast %c1_i32_3 : i32 to vector<1x256xi32>
    %18 = arith.cmpi sge, %16, %17 : vector<1x256xi32>
    %19 = arith.extui %18 : vector<1x256xi1> to vector<1x256xi32>
    %20 = arith.sitofp %19 : vector<1x256xi32> to vector<1x256xf32>
    %c14_i32 = arith.constant 14 : i32
    %21 = vector.broadcast %c14_i32 : i32 to vector<1x256xi32>
    %22 = arith.cmpi sle, %16, %21 : vector<1x256xi32>
    %23 = arith.extui %22 : vector<1x256xi1> to vector<1x256xi32>
    %24 = arith.sitofp %23 : vector<1x256xi32> to vector<1x256xf32>
    %cst = arith.constant 0.000000e+00 : f32
    %25 = vector.broadcast %cst : f32 to vector<8x17xf32>
    %c0 = arith.constant 0 : index
    %c0_4 = arith.constant 0 : index
    %26 = vector.load %arg7[%c0, %c0_4] : memref<8x580xf32, #tpu.memory_space<vmem>>, vector<8x17xf32>
    tpu.vector_store %arg7[%c0, %c0_4], %25 {strides = array<i32>} : memref<8x580xf32, #tpu.memory_space<vmem>>, vector<8x17xf32>,
    %c0_5 = arith.constant 0 : index
    %c273 = arith.constant 273 : index
    %27 = vector.load %arg7[%c0_5, %c273] : memref<8x580xf32, #tpu.memory_space<vmem>>, vector<8x17xf32>
    tpu.vector_store %arg7[%c0_5, %c273], %25 {strides = array<i32>} : memref<8x580xf32, #tpu.memory_space<vmem>>, vector<8x17xf32>,
    %cst_6 = arith.constant 0.000000e+00 : f32
    %28 = vector.broadcast %cst_6 : f32 to vector<5x256xf32>
    %c3 = arith.constant 3 : index
    %c17 = arith.constant 17 : index
    %29 = vector.load %arg7[%c3, %c17] : memref<8x580xf32, #tpu.memory_space<vmem>>, vector<5x256xf32>
    tpu.vector_store %arg7[%c3, %c17], %28 {strides = array<i32>} : memref<8x580xf32, #tpu.memory_space<vmem>>, vector<5x256xf32>,
    %c0_7 = arith.constant 0 : index
    %c290 = arith.constant 290 : index
    %30 = vector.load %arg7[%c0_7, %c290] : memref<8x580xf32, #tpu.memory_space<vmem>>, vector<8x17xf32>
    tpu.vector_store %arg7[%c0_7, %c290], %25 {strides = array<i32>} : memref<8x580xf32, #tpu.memory_space<vmem>>, vector<8x17xf32>,
    %c0_8 = arith.constant 0 : index
    %c563 = arith.constant 563 : index
    %31 = vector.load %arg7[%c0_8, %c563] : memref<8x580xf32, #tpu.memory_space<vmem>>, vector<8x17xf32>
    tpu.vector_store %arg7[%c0_8, %c563], %25 {strides = array<i32>} : memref<8x580xf32, #tpu.memory_space<vmem>>, vector<8x17xf32>,
    %cst_9 = arith.constant 0.000000e+00 : f32
    %32 = vector.broadcast %cst_9 : f32 to vector<5x256xf32>
    %c3_10 = arith.constant 3 : index
    %c307 = arith.constant 307 : index
    %33 = vector.load %arg7[%c3_10, %c307] : memref<8x580xf32, #tpu.memory_space<vmem>>, vector<5x256xf32>
    tpu.vector_store %arg7[%c3_10, %c307], %32 {strides = array<i32>} : memref<8x580xf32, #tpu.memory_space<vmem>>, vector<5x256xf32>,
    %c0_11 = arith.constant 0 : index
    %c0_12 = arith.constant 0 : index
    %c0_13 = arith.constant 0 : index
    %34 = vector.load %arg1[%c0_11, %c0_12, %c0_13] : memref<2x4x256xf32, #tpu.memory_space<vmem>>, vector<1x4x256xf32>
    %35 = vector.shape_cast %34 : vector<1x4x256xf32> to vector<4x256xf32>
    %c1 = arith.constant 1 : index
    %c0_14 = arith.constant 0 : index
    %c0_15 = arith.constant 0 : index
    %36 = vector.load %arg1[%c1, %c0_14, %c0_15] : memref<2x4x256xf32, #tpu.memory_space<vmem>>, vector<1x4x256xf32>
    %37 = vector.shape_cast %36 : vector<1x4x256xf32> to vector<4x256xf32>
    %c0_16 = arith.constant 0 : index
    %c17_17 = arith.constant 17 : index
    %38 = vector.load %arg7[%c0_16, %c17_17] : memref<8x580xf32, #tpu.memory_space<vmem>>, vector<4x256xf32>
    tpu.vector_store %arg7[%c0_16, %c17_17], %35 {strides = array<i32>} : memref<8x580xf32, #tpu.memory_space<vmem>>, vector<4x256xf32>,
    %c0_18 = arith.constant 0 : index
    %c307_19 = arith.constant 307 : index
    %39 = vector.load %arg7[%c0_18, %c307_19] : memref<8x580xf32, #tpu.memory_space<vmem>>, vector<4x256xf32>
    tpu.vector_store %arg7[%c0_18, %c307_19], %37 {strides = array<i32>} : memref<8x580xf32, #tpu.memory_space<vmem>>, vector<4x256xf32>,
    %c0_20 = arith.constant 0 : index
    %c0_21 = arith.constant 0 : index
    %40 = vector.load %arg7[%c0_20, %c0_21] : memref<8x580xf32, #tpu.memory_space<vmem>>, vector<8x256xf32>
    %41 = vector.broadcast %20 : vector<1x256xf32> to vector<8x256xf32>
    %42 = arith.mulf %40, %41 : vector<8x256xf32>
    %c0_22 = arith.constant 0 : index
    %c0_23 = arith.constant 0 : index
    %43 = vector.load %arg8[%c0_22, %c0_23] : memref<72x512xf32, #tpu.memory_space<vmem>>, vector<8x256xf32>
    tpu.vector_store %arg8[%c0_22, %c0_23], %42 {strides = array<i32>} : memref<72x512xf32, #tpu.memory_space<vmem>>, vector<8x256xf32>,
    %c0_24 = arith.constant 0 : index
    %c290_25 = arith.constant 290 : index
    %44 = vector.load %arg7[%c0_24, %c290_25] : memref<8x580xf32, #tpu.memory_space<vmem>>, vector<8x256xf32>
    %45 = vector.broadcast %20 : vector<1x256xf32> to vector<8x256xf32>
    %46 = arith.mulf %44, %45 : vector<8x256xf32>
    %c0_26 = arith.constant 0 : index
    %c256 = arith.constant 256 : index
    %47 = vector.load %arg8[%c0_26, %c256] : memref<72x512xf32, #tpu.memory_space<vmem>>, vector<8x256xf32>
    tpu.vector_store %arg8[%c0_26, %c256], %46 {strides = array<i32>} : memref<72x512xf32, #tpu.memory_space<vmem>>, vector<8x256xf32>,
    %c0_27 = arith.constant 0 : index
    %c1_28 = arith.constant 1 : index
    %48 = vector.load %arg7[%c0_27, %c1_28] : memref<8x580xf32, #tpu.memory_space<vmem>>, vector<8x256xf32>
    %c8 = arith.constant 8 : index
    %c0_29 = arith.constant 0 : index
    %49 = vector.load %arg8[%c8, %c0_29] : memref<72x512xf32, #tpu.memory_space<vmem>>, vector<8x256xf32>
    tpu.vector_store %arg8[%c8, %c0_29], %48 {strides = array<i32>} : memref<72x512xf32, #tpu.memory_space<vmem>>, vector<8x256xf32>,
    %c0_30 = arith.constant 0 : index
    %c291 = arith.constant 291 : index
    %50 = vector.load %arg7[%c0_30, %c291] : memref<8x580xf32, #tpu.memory_space<vmem>>, vector<8x256xf32>
    %c8_31 = arith.constant 8 : index
    %c256_32 = arith.constant 256 : index
    %51 = vector.load %arg8[%c8_31, %c256_32] : memref<72x512xf32, #tpu.memory_space<vmem>>, vector<8x256xf32>
    tpu.vector_store %arg8[%c8_31, %c256_32], %50 {strides = array<i32>} : memref<72x512xf32, #tpu.memory_space<vmem>>, vector<8x256xf32>,
    %c0_33 = arith.constant 0 : index
    %c2 = arith.constant 2 : index
    %52 = vector.load %arg7[%c0_33, %c2] : memref<8x580xf32, #tpu.memory_space<vmem>>, vector<8x256xf32>
    %53 = vector.broadcast %24 : vector<1x256xf32> to vector<8x256xf32>
    %54 = arith.mulf %52, %53 : vector<8x256xf32>
    %c16 = arith.constant 16 : index
    %c0_34 = arith.constant 0 : index
    %55 = vector.load %arg8[%c16, %c0_34] : memref<72x512xf32, #tpu.memory_space<vmem>>, vector<8x256xf32>
    tpu.vector_store %arg8[%c16, %c0_34], %54 {strides = array<i32>} : memref<72x512xf32, #tpu.memory_space<vmem>>, vector<8x256xf32>,
    %c0_35 = arith.constant 0 : index
    %c292 = arith.constant 292 : index
    %56 = vector.load %arg7[%c0_35, %c292] : memref<8x580xf32, #tpu.memory_space<vmem>>, vector<8x256xf32>
    %57 = vector.broadcast %24 : vector<1x256xf32> to vector<8x256xf32>
    %58 = arith.mulf %56, %57 : vector<8x256xf32>
    %c16_36 = arith.constant 16 : index
    %c256_37 = arith.constant 256 : index
    %59 = vector.load %arg8[%c16_36, %c256_37] : memref<72x512xf32, #tpu.memory_space<vmem>>, vector<8x256xf32>
    tpu.vector_store %arg8[%c16_36, %c256_37], %58 {strides = array<i32>} : memref<72x512xf32, #tpu.memory_space<vmem>>, vector<8x256xf32>,
    %c0_38 = arith.constant 0 : index
    %c16_39 = arith.constant 16 : index
    %60 = vector.load %arg7[%c0_38, %c16_39] : memref<8x580xf32, #tpu.memory_space<vmem>>, vector<8x256xf32>
    %61 = vector.broadcast %20 : vector<1x256xf32> to vector<8x256xf32>
    %62 = arith.mulf %60, %61 : vector<8x256xf32>
    %c24 = arith.constant 24 : index
    %c0_40 = arith.constant 0 : index
    %63 = vector.load %arg8[%c24, %c0_40] : memref<72x512xf32, #tpu.memory_space<vmem>>, vector<8x256xf32>
    tpu.vector_store %arg8[%c24, %c0_40], %62 {strides = array<i32>} : memref<72x512xf32, #tpu.memory_space<vmem>>, vector<8x256xf32>,
    %c0_41 = arith.constant 0 : index
    %c306 = arith.constant 306 : index
    %64 = vector.load %arg7[%c0_41, %c306] : memref<8x580xf32, #tpu.memory_space<vmem>>, vector<8x256xf32>
    %65 = vector.broadcast %20 : vector<1x256xf32> to vector<8x256xf32>
    %66 = arith.mulf %64, %65 : vector<8x256xf32>
    %c24_42 = arith.constant 24 : index
    %c256_43 = arith.constant 256 : index
    %67 = vector.load %arg8[%c24_42, %c256_43] : memref<72x512xf32, #tpu.memory_space<vmem>>, vector<8x256xf32>
    tpu.vector_store %arg8[%c24_42, %c256_43], %66 {strides = array<i32>} : memref<72x512xf32, #tpu.memory_space<vmem>>, vector<8x256xf32>,
    %c0_44 = arith.constant 0 : index
    %c17_45 = arith.constant 17 : index
    %68 = vector.load %arg7[%c0_44, %c17_45] : memref<8x580xf32, #tpu.memory_space<vmem>>, vector<8x256xf32>
    %c32 = arith.constant 32 : index
    %c0_46 = arith.constant 0 : index
    %69 = vector.load %arg8[%c32, %c0_46] : memref<72x512xf32, #tpu.memory_space<vmem>>, vector<8x256xf32>
    tpu.vector_store %arg8[%c32, %c0_46], %68 {strides = array<i32>} : memref<72x512xf32, #tpu.memory_space<vmem>>, vector<8x256xf32>,
    %c0_47 = arith.constant 0 : index
    %c307_48 = arith.constant 307 : index
    %70 = vector.load %arg7[%c0_47, %c307_48] : memref<8x580xf32, #tpu.memory_space<vmem>>, vector<8x256xf32>
    %c32_49 = arith.constant 32 : index
    %c256_50 = arith.constant 256 : index
    %71 = vector.load %arg8[%c32_49, %c256_50] : memref<72x512xf32, #tpu.memory_space<vmem>>, vector<8x256xf32>
    tpu.vector_store %arg8[%c32_49, %c256_50], %70 {strides = array<i32>} : memref<72x512xf32, #tpu.memory_space<vmem>>, vector<8x256xf32>,
    %c0_51 = arith.constant 0 : index
    %c18 = arith.constant 18 : index
    %72 = vector.load %arg7[%c0_51, %c18] : memref<8x580xf32, #tpu.memory_space<vmem>>, vector<8x256xf32>
    %73 = vector.broadcast %24 : vector<1x256xf32> to vector<8x256xf32>
    %74 = arith.mulf %72, %73 : vector<8x256xf32>
    %c40 = arith.constant 40 : index
    %c0_52 = arith.constant 0 : index
    %75 = vector.load %arg8[%c40, %c0_52] : memref<72x512xf32, #tpu.memory_space<vmem>>, vector<8x256xf32>
    tpu.vector_store %arg8[%c40, %c0_52], %74 {strides = array<i32>} : memref<72x512xf32, #tpu.memory_space<vmem>>, vector<8x256xf32>,
    %c0_53 = arith.constant 0 : index
    %c308 = arith.constant 308 : index
    %76 = vector.load %arg7[%c0_53, %c308] : memref<8x580xf32, #tpu.memory_space<vmem>>, vector<8x256xf32>
    %77 = vector.broadcast %24 : vector<1x256xf32> to vector<8x256xf32>
    %78 = arith.mulf %76, %77 : vector<8x256xf32>
    %c40_54 = arith.constant 40 : index
    %c256_55 = arith.constant 256 : index
    %79 = vector.load %arg8[%c40_54, %c256_55] : memref<72x512xf32, #tpu.memory_space<vmem>>, vector<8x256xf32>
    tpu.vector_store %arg8[%c40_54, %c256_55], %78 {strides = array<i32>} : memref<72x512xf32, #tpu.memory_space<vmem>>, vector<8x256xf32>,
    %c0_56 = arith.constant 0 : index
    %c32_57 = arith.constant 32 : index
    %80 = vector.load %arg7[%c0_56, %c32_57] : memref<8x580xf32, #tpu.memory_space<vmem>>, vector<8x256xf32>
    %81 = vector.broadcast %20 : vector<1x256xf32> to vector<8x256xf32>
    %82 = arith.mulf %80, %81 : vector<8x256xf32>
    %c48 = arith.constant 48 : index
    %c0_58 = arith.constant 0 : index
    %83 = vector.load %arg8[%c48, %c0_58] : memref<72x512xf32, #tpu.memory_space<vmem>>, vector<8x256xf32>
    tpu.vector_store %arg8[%c48, %c0_58], %82 {strides = array<i32>} : memref<72x512xf32, #tpu.memory_space<vmem>>, vector<8x256xf32>,
    %c0_59 = arith.constant 0 : index
    %c322 = arith.constant 322 : index
    %84 = vector.load %arg7[%c0_59, %c322] : memref<8x580xf32, #tpu.memory_space<vmem>>, vector<8x256xf32>
    %85 = vector.broadcast %20 : vector<1x256xf32> to vector<8x256xf32>
    %86 = arith.mulf %84, %85 : vector<8x256xf32>
    %c48_60 = arith.constant 48 : index
    %c256_61 = arith.constant 256 : index
    %87 = vector.load %arg8[%c48_60, %c256_61] : memref<72x512xf32, #tpu.memory_space<vmem>>, vector<8x256xf32>
    tpu.vector_store %arg8[%c48_60, %c256_61], %86 {strides = array<i32>} : memref<72x512xf32, #tpu.memory_space<vmem>>, vector<8x256xf32>,
    %c0_62 = arith.constant 0 : index
    %c33 = arith.constant 33 : index
    %88 = vector.load %arg7[%c0_62, %c33] : memref<8x580xf32, #tpu.memory_space<vmem>>, vector<8x256xf32>
    %c56 = arith.constant 56 : index
    %c0_63 = arith.constant 0 : index
    %89 = vector.load %arg8[%c56, %c0_63] : memref<72x512xf32, #tpu.memory_space<vmem>>, vector<8x256xf32>
    tpu.vector_store %arg8[%c56, %c0_63], %88 {strides = array<i32>} : memref<72x512xf32, #tpu.memory_space<vmem>>, vector<8x256xf32>,
    %c0_64 = arith.constant 0 : index
    %c323 = arith.constant 323 : index
    %90 = vector.load %arg7[%c0_64, %c323] : memref<8x580xf32, #tpu.memory_space<vmem>>, vector<8x256xf32>
    %c56_65 = arith.constant 56 : index
    %c256_66 = arith.constant 256 : index
    %91 = vector.load %arg8[%c56_65, %c256_66] : memref<72x512xf32, #tpu.memory_space<vmem>>, vector<8x256xf32>
    tpu.vector_store %arg8[%c56_65, %c256_66], %90 {strides = array<i32>} : memref<72x512xf32, #tpu.memory_space<vmem>>, vector<8x256xf32>,
    %c0_67 = arith.constant 0 : index
    %c34 = arith.constant 34 : index
    %92 = vector.load %arg7[%c0_67, %c34] : memref<8x580xf32, #tpu.memory_space<vmem>>, vector<8x256xf32>
    %93 = vector.broadcast %24 : vector<1x256xf32> to vector<8x256xf32>
    %94 = arith.mulf %92, %93 : vector<8x256xf32>
    %c64 = arith.constant 64 : index
    %c0_68 = arith.constant 0 : index
    %95 = vector.load %arg8[%c64, %c0_68] : memref<72x512xf32, #tpu.memory_space<vmem>>, vector<8x256xf32>
    tpu.vector_store %arg8[%c64, %c0_68], %94 {strides = array<i32>} : memref<72x512xf32, #tpu.memory_space<vmem>>, vector<8x256xf32>,
    %c0_69 = arith.constant 0 : index
    %c324 = arith.constant 324 : index
    %96 = vector.load %arg7[%c0_69, %c324] : memref<8x580xf32, #tpu.memory_space<vmem>>, vector<8x256xf32>
    %97 = vector.broadcast %24 : vector<1x256xf32> to vector<8x256xf32>
    %98 = arith.mulf %96, %97 : vector<8x256xf32>
    %c64_70 = arith.constant 64 : index
    %c256_71 = arith.constant 256 : index
    %99 = vector.load %arg8[%c64_70, %c256_71] : memref<72x512xf32, #tpu.memory_space<vmem>>, vector<8x256xf32>
    tpu.vector_store %arg8[%c64_70, %c256_71], %98 {strides = array<i32>} : memref<72x512xf32, #tpu.memory_space<vmem>>, vector<8x256xf32>,
    %c0_72 = arith.constant 0 : index
    %c0_73 = arith.constant 0 : index
    %100 = vector.load %arg2[%c0_72, %c0_73] : memref<3x72xf32, #tpu.memory_space<vmem>>, vector<3x72xf32>
    %c0_74 = arith.constant 0 : index
    %c0_75 = arith.constant 0 : index
    %101 = vector.load %arg8[%c0_74, %c0_75] : memref<72x512xf32, #tpu.memory_space<vmem>>, vector<72x512xf32>
    %cst_76 = arith.constant dense<0.000000e+00> : vector<3x512xf32>
    %102 = tpu.matmul %100, %101, %cst_76 {dimension_numbers = #tpu.dot_dimension_numbers<[1], [0], [0], [1], [0, 0, 1, 1], [], []>} : vector<3x72xf32>, vector<72x512xf32>, vector<3x512xf32> -> vector<3x512xf32>
    %c0_77 = arith.constant 0 : index
    %c0_78 = arith.constant 0 : index
    %103 = vector.load %arg3[%c0_77, %c0_78] : memref<3x1xf32, #tpu.memory_space<vmem>>, vector<3x1xf32>
    %104 = vector.broadcast %103 : vector<3x1xf32> to vector<3x512xf32>
    %105 = arith.addf %102, %104 : vector<3x512xf32>
    %cst_79 = arith.constant 0.000000e+00 : f32
    %106 = vector.broadcast %cst_79 : f32 to vector<3x512xf32>
    %107 = arith.maximumf %105, %106 : vector<3x512xf32>
    %108 = vector.extract_strided_slice %107 {offsets = [0, 0], sizes = [3, 256], strides = [1, 1]} : vector<3x512xf32> to vector<3x256xf32>
    %109 = vector.extract_strided_slice %107 {offsets = [0, 256], sizes = [3, 256], strides = [1, 1]} : vector<3x512xf32> to vector<3x256xf32>
    %c0_80 = arith.constant 0 : index
    %c17_81 = arith.constant 17 : index
    %110 = vector.load %arg7[%c0_80, %c17_81] : memref<8x580xf32, #tpu.memory_space<vmem>>, vector<3x256xf32>
    tpu.vector_store %arg7[%c0_80, %c17_81], %108 {strides = array<i32>} : memref<8x580xf32, #tpu.memory_space<vmem>>, vector<3x256xf32>,
    %c0_82 = arith.constant 0 : index
    %c307_83 = arith.constant 307 : index
    %111 = vector.load %arg7[%c0_82, %c307_83] : memref<8x580xf32, #tpu.memory_space<vmem>>, vector<3x256xf32>
    tpu.vector_store %arg7[%c0_82, %c307_83], %109 {strides = array<i32>} : memref<8x580xf32, #tpu.memory_space<vmem>>, vector<3x256xf32>,
    %c0_84 = arith.constant 0 : index
    %c0_85 = arith.constant 0 : index
    %112 = vector.load %arg7[%c0_84, %c0_85] : memref<8x580xf32, #tpu.memory_space<vmem>>, vector<8x256xf32>
    %113 = vector.broadcast %20 : vector<1x256xf32> to vector<8x256xf32>
    %114 = arith.mulf %112, %113 : vector<8x256xf32>
    %c0_86 = arith.constant 0 : index
    %c0_87 = arith.constant 0 : index
    %115 = vector.load %arg8[%c0_86, %c0_87] : memref<72x512xf32, #tpu.memory_space<vmem>>, vector<8x256xf32>
    tpu.vector_store %arg8[%c0_86, %c0_87], %114 {strides = array<i32>} : memref<72x512xf32, #tpu.memory_space<vmem>>, vector<8x256xf32>,
    %c0_88 = arith.constant 0 : index
    %c290_89 = arith.constant 290 : index
    %116 = vector.load %arg7[%c0_88, %c290_89] : memref<8x580xf32, #tpu.memory_space<vmem>>, vector<8x256xf32>
    %117 = vector.broadcast %20 : vector<1x256xf32> to vector<8x256xf32>
    %118 = arith.mulf %116, %117 : vector<8x256xf32>
    %c0_90 = arith.constant 0 : index
    %c256_91 = arith.constant 256 : index
    %119 = vector.load %arg8[%c0_90, %c256_91] : memref<72x512xf32, #tpu.memory_space<vmem>>, vector<8x256xf32>
    tpu.vector_store %arg8[%c0_90, %c256_91], %118 {strides = array<i32>} : memref<72x512xf32, #tpu.memory_space<vmem>>, vector<8x256xf32>,
    %c0_92 = arith.constant 0 : index
    %c1_93 = arith.constant 1 : index
    %120 = vector.load %arg7[%c0_92, %c1_93] : memref<8x580xf32, #tpu.memory_space<vmem>>, vector<8x256xf32>
    %c8_94 = arith.constant 8 : index
    %c0_95 = arith.constant 0 : index
    %121 = vector.load %arg8[%c8_94, %c0_95] : memref<72x512xf32, #tpu.memory_space<vmem>>, vector<8x256xf32>
    tpu.vector_store %arg8[%c8_94, %c0_95], %120 {strides = array<i32>} : memref<72x512xf32, #tpu.memory_space<vmem>>, vector<8x256xf32>,
    %c0_96 = arith.constant 0 : index
    %c291_97 = arith.constant 291 : index
    %122 = vector.load %arg7[%c0_96, %c291_97] : memref<8x580xf32, #tpu.memory_space<vmem>>, vector<8x256xf32>
    %c8_98 = arith.constant 8 : index
    %c256_99 = arith.constant 256 : index
    %123 = vector.load %arg8[%c8_98, %c256_99] : memref<72x512xf32, #tpu.memory_space<vmem>>, vector<8x256xf32>
    tpu.vector_store %arg8[%c8_98, %c256_99], %122 {strides = array<i32>} : memref<72x512xf32, #tpu.memory_space<vmem>>, vector<8x256xf32>,
    %c0_100 = arith.constant 0 : index
    %c2_101 = arith.constant 2 : index
    %124 = vector.load %arg7[%c0_100, %c2_101] : memref<8x580xf32, #tpu.memory_space<vmem>>, vector<8x256xf32>
    %125 = vector.broadcast %24 : vector<1x256xf32> to vector<8x256xf32>
    %126 = arith.mulf %124, %125 : vector<8x256xf32>
    %c16_102 = arith.constant 16 : index
    %c0_103 = arith.constant 0 : index
    %127 = vector.load %arg8[%c16_102, %c0_103] : memref<72x512xf32, #tpu.memory_space<vmem>>, vector<8x256xf32>
    tpu.vector_store %arg8[%c16_102, %c0_103], %126 {strides = array<i32>} : memref<72x512xf32, #tpu.memory_space<vmem>>, vector<8x256xf32>,
    %c0_104 = arith.constant 0 : index
    %c292_105 = arith.constant 292 : index
    %128 = vector.load %arg7[%c0_104, %c292_105] : memref<8x580xf32, #tpu.memory_space<vmem>>, vector<8x256xf32>
    %129 = vector.broadcast %24 : vector<1x256xf32> to vector<8x256xf32>
    %130 = arith.mulf %128, %129 : vector<8x256xf32>
    %c16_106 = arith.constant 16 : index
    %c256_107 = arith.constant 256 : index
    %131 = vector.load %arg8[%c16_106, %c256_107] : memref<72x512xf32, #tpu.memory_space<vmem>>, vector<8x256xf32>
    tpu.vector_store %arg8[%c16_106, %c256_107], %130 {strides = array<i32>} : memref<72x512xf32, #tpu.memory_space<vmem>>, vector<8x256xf32>,
    %c0_108 = arith.constant 0 : index
    %c16_109 = arith.constant 16 : index
    %132 = vector.load %arg7[%c0_108, %c16_109] : memref<8x580xf32, #tpu.memory_space<vmem>>, vector<8x256xf32>
    %133 = vector.broadcast %20 : vector<1x256xf32> to vector<8x256xf32>
    %134 = arith.mulf %132, %133 : vector<8x256xf32>
    %c24_110 = arith.constant 24 : index
    %c0_111 = arith.constant 0 : index
    %135 = vector.load %arg8[%c24_110, %c0_111] : memref<72x512xf32, #tpu.memory_space<vmem>>, vector<8x256xf32>
    tpu.vector_store %arg8[%c24_110, %c0_111], %134 {strides = array<i32>} : memref<72x512xf32, #tpu.memory_space<vmem>>, vector<8x256xf32>,
    %c0_112 = arith.constant 0 : index
    %c306_113 = arith.constant 306 : index
    %136 = vector.load %arg7[%c0_112, %c306_113] : memref<8x580xf32, #tpu.memory_space<vmem>>, vector<8x256xf32>
    %137 = vector.broadcast %20 : vector<1x256xf32> to vector<8x256xf32>
    %138 = arith.mulf %136, %137 : vector<8x256xf32>
    %c24_114 = arith.constant 24 : index
    %c256_115 = arith.constant 256 : index
    %139 = vector.load %arg8[%c24_114, %c256_115] : memref<72x512xf32, #tpu.memory_space<vmem>>, vector<8x256xf32>
    tpu.vector_store %arg8[%c24_114, %c256_115], %138 {strides = array<i32>} : memref<72x512xf32, #tpu.memory_space<vmem>>, vector<8x256xf32>,
    %c0_116 = arith.constant 0 : index
    %c17_117 = arith.constant 17 : index
    %140 = vector.load %arg7[%c0_116, %c17_117] : memref<8x580xf32, #tpu.memory_space<vmem>>, vector<8x256xf32>
    %c32_118 = arith.constant 32 : index
    %c0_119 = arith.constant 0 : index
    %141 = vector.load %arg8[%c32_118, %c0_119] : memref<72x512xf32, #tpu.memory_space<vmem>>, vector<8x256xf32>
    tpu.vector_store %arg8[%c32_118, %c0_119], %140 {strides = array<i32>} : memref<72x512xf32, #tpu.memory_space<vmem>>, vector<8x256xf32>,
    %c0_120 = arith.constant 0 : index
    %c307_121 = arith.constant 307 : index
    %142 = vector.load %arg7[%c0_120, %c307_121] : memref<8x580xf32, #tpu.memory_space<vmem>>, vector<8x256xf32>
    %c32_122 = arith.constant 32 : index
    %c256_123 = arith.constant 256 : index
    %143 = vector.load %arg8[%c32_122, %c256_123] : memref<72x512xf32, #tpu.memory_space<vmem>>, vector<8x256xf32>
    tpu.vector_store %arg8[%c32_122, %c256_123], %142 {strides = array<i32>} : memref<72x512xf32, #tpu.memory_space<vmem>>, vector<8x256xf32>,
    %c0_124 = arith.constant 0 : index
    %c18_125 = arith.constant 18 : index
    %144 = vector.load %arg7[%c0_124, %c18_125] : memref<8x580xf32, #tpu.memory_space<vmem>>, vector<8x256xf32>
    %145 = vector.broadcast %24 : vector<1x256xf32> to vector<8x256xf32>
    %146 = arith.mulf %144, %145 : vector<8x256xf32>
    %c40_126 = arith.constant 40 : index
    %c0_127 = arith.constant 0 : index
    %147 = vector.load %arg8[%c40_126, %c0_127] : memref<72x512xf32, #tpu.memory_space<vmem>>, vector<8x256xf32>
    tpu.vector_store %arg8[%c40_126, %c0_127], %146 {strides = array<i32>} : memref<72x512xf32, #tpu.memory_space<vmem>>, vector<8x256xf32>,
    %c0_128 = arith.constant 0 : index
    %c308_129 = arith.constant 308 : index
    %148 = vector.load %arg7[%c0_128, %c308_129] : memref<8x580xf32, #tpu.memory_space<vmem>>, vector<8x256xf32>
    %149 = vector.broadcast %24 : vector<1x256xf32> to vector<8x256xf32>
    %150 = arith.mulf %148, %149 : vector<8x256xf32>
    %c40_130 = arith.constant 40 : index
    %c256_131 = arith.constant 256 : index
    %151 = vector.load %arg8[%c40_130, %c256_131] : memref<72x512xf32, #tpu.memory_space<vmem>>, vector<8x256xf32>
    tpu.vector_store %arg8[%c40_130, %c256_131], %150 {strides = array<i32>} : memref<72x512xf32, #tpu.memory_space<vmem>>, vector<8x256xf32>,
    %c0_132 = arith.constant 0 : index
    %c32_133 = arith.constant 32 : index
    %152 = vector.load %arg7[%c0_132, %c32_133] : memref<8x580xf32, #tpu.memory_space<vmem>>, vector<8x256xf32>
    %153 = vector.broadcast %20 : vector<1x256xf32> to vector<8x256xf32>
    %154 = arith.mulf %152, %153 : vector<8x256xf32>
    %c48_134 = arith.constant 48 : index
    %c0_135 = arith.constant 0 : index
    %155 = vector.load %arg8[%c48_134, %c0_135] : memref<72x512xf32, #tpu.memory_space<vmem>>, vector<8x256xf32>
    tpu.vector_store %arg8[%c48_134, %c0_135], %154 {strides = array<i32>} : memref<72x512xf32, #tpu.memory_space<vmem>>, vector<8x256xf32>,
    %c0_136 = arith.constant 0 : index
    %c322_137 = arith.constant 322 : index
    %156 = vector.load %arg7[%c0_136, %c322_137] : memref<8x580xf32, #tpu.memory_space<vmem>>, vector<8x256xf32>
    %157 = vector.broadcast %20 : vector<1x256xf32> to vector<8x256xf32>
    %158 = arith.mulf %156, %157 : vector<8x256xf32>
    %c48_138 = arith.constant 48 : index
    %c256_139 = arith.constant 256 : index
    %159 = vector.load %arg8[%c48_138, %c256_139] : memref<72x512xf32, #tpu.memory_space<vmem>>, vector<8x256xf32>
    tpu.vector_store %arg8[%c48_138, %c256_139], %158 {strides = array<i32>} : memref<72x512xf32, #tpu.memory_space<vmem>>, vector<8x256xf32>,
    %c0_140 = arith.constant 0 : index
    %c33_141 = arith.constant 33 : index
    %160 = vector.load %arg7[%c0_140, %c33_141] : memref<8x580xf32, #tpu.memory_space<vmem>>, vector<8x256xf32>
    %c56_142 = arith.constant 56 : index
    %c0_143 = arith.constant 0 : index
    %161 = vector.load %arg8[%c56_142, %c0_143] : memref<72x512xf32, #tpu.memory_space<vmem>>, vector<8x256xf32>
    tpu.vector_store %arg8[%c56_142, %c0_143], %160 {strides = array<i32>} : memref<72x512xf32, #tpu.memory_space<vmem>>, vector<8x256xf32>,
    %c0_144 = arith.constant 0 : index
    %c323_145 = arith.constant 323 : index
    %162 = vector.load %arg7[%c0_144, %c323_145] : memref<8x580xf32, #tpu.memory_space<vmem>>, vector<8x256xf32>
    %c56_146 = arith.constant 56 : index
    %c256_147 = arith.constant 256 : index
    %163 = vector.load %arg8[%c56_146, %c256_147] : memref<72x512xf32, #tpu.memory_space<vmem>>, vector<8x256xf32>
    tpu.vector_store %arg8[%c56_146, %c256_147], %162 {strides = array<i32>} : memref<72x512xf32, #tpu.memory_space<vmem>>, vector<8x256xf32>,
    %c0_148 = arith.constant 0 : index
    %c34_149 = arith.constant 34 : index
    %164 = vector.load %arg7[%c0_148, %c34_149] : memref<8x580xf32, #tpu.memory_space<vmem>>, vector<8x256xf32>
    %165 = vector.broadcast %24 : vector<1x256xf32> to vector<8x256xf32>
    %166 = arith.mulf %164, %165 : vector<8x256xf32>
    %c64_150 = arith.constant 64 : index
    %c0_151 = arith.constant 0 : index
    %167 = vector.load %arg8[%c64_150, %c0_151] : memref<72x512xf32, #tpu.memory_space<vmem>>, vector<8x256xf32>
    tpu.vector_store %arg8[%c64_150, %c0_151], %166 {strides = array<i32>} : memref<72x512xf32, #tpu.memory_space<vmem>>, vector<8x256xf32>,
    %c0_152 = arith.constant 0 : index
    %c324_153 = arith.constant 324 : index
    %168 = vector.load %arg7[%c0_152, %c324_153] : memref<8x580xf32, #tpu.memory_space<vmem>>, vector<8x256xf32>
    %169 = vector.broadcast %24 : vector<1x256xf32> to vector<8x256xf32>
    %170 = arith.mulf %168, %169 : vector<8x256xf32>
    %c64_154 = arith.constant 64 : index
    %c256_155 = arith.constant 256 : index
    %171 = vector.load %arg8[%c64_154, %c256_155] : memref<72x512xf32, #tpu.memory_space<vmem>>, vector<8x256xf32>
    tpu.vector_store %arg8[%c64_154, %c256_155], %170 {strides = array<i32>} : memref<72x512xf32, #tpu.memory_space<vmem>>, vector<8x256xf32>,
    %c0_156 = arith.constant 0 : index
    %c0_157 = arith.constant 0 : index
    %172 = vector.load %arg4[%c0_156, %c0_157] : memref<4x72xf32, #tpu.memory_space<vmem>>, vector<4x72xf32>
    %c0_158 = arith.constant 0 : index
    %c0_159 = arith.constant 0 : index
    %173 = vector.load %arg8[%c0_158, %c0_159] : memref<72x512xf32, #tpu.memory_space<vmem>>, vector<72x512xf32>
    %cst_160 = arith.constant dense<0.000000e+00> : vector<4x512xf32>
    %174 = tpu.matmul %172, %173, %cst_160 {dimension_numbers = #tpu.dot_dimension_numbers<[1], [0], [0], [1], [0, 0, 1, 1], [], []>} : vector<4x72xf32>, vector<72x512xf32>, vector<4x512xf32> -> vector<4x512xf32>
    %c0_161 = arith.constant 0 : index
    %c0_162 = arith.constant 0 : index
    %175 = vector.load %arg5[%c0_161, %c0_162] : memref<4x1xf32, #tpu.memory_space<vmem>>, vector<4x1xf32>
    %176 = vector.broadcast %175 : vector<4x1xf32> to vector<4x512xf32>
    %177 = arith.addf %174, %176 : vector<4x512xf32>
    %178 = vector.extract_strided_slice %177 {offsets = [0, 0], sizes = [4, 256], strides = [1, 1]} : vector<4x512xf32> to vector<4x256xf32>
    %179 = arith.addf %35, %178 : vector<4x256xf32>
    %cst_163 = arith.constant 0.000000e+00 : f32
    %180 = vector.broadcast %cst_163 : f32 to vector<4x256xf32>
    %181 = arith.maximumf %179, %180 : vector<4x256xf32>
    %c0_164 = arith.constant 0 : index
    %c0_165 = arith.constant 0 : index
    %c0_166 = arith.constant 0 : index
    %182 = vector.load %arg6[%c0_164, %c0_165, %c0_166] : memref<2x4x256xf32, #tpu.memory_space<vmem>>, vector<1x4x256xf32>
    %183 = vector.shape_cast %182 : vector<1x4x256xf32> to vector<4x256xf32>
    %184 = vector.shape_cast %181 : vector<4x256xf32> to vector<1x4x256xf32>
    tpu.vector_store %arg6[%c0_164, %c0_165, %c0_166], %184 {strides = array<i32>} : memref<2x4x256xf32, #tpu.memory_space<vmem>>, vector<1x4x256xf32>,
    %185 = vector.extract_strided_slice %177 {offsets = [0, 256], sizes = [4, 256], strides = [1, 1]} : vector<4x512xf32> to vector<4x256xf32>
    %186 = arith.addf %37, %185 : vector<4x256xf32>
    %cst_167 = arith.constant 0.000000e+00 : f32
    %187 = vector.broadcast %cst_167 : f32 to vector<4x256xf32>
    %188 = arith.maximumf %186, %187 : vector<4x256xf32>
    %c1_168 = arith.constant 1 : index
    %c0_169 = arith.constant 0 : index
    %c0_170 = arith.constant 0 : index
    %189 = vector.load %arg6[%c1_168, %c0_169, %c0_170] : memref<2x4x256xf32, #tpu.memory_space<vmem>>, vector<1x4x256xf32>
    %190 = vector.shape_cast %189 : vector<1x4x256xf32> to vector<4x256xf32>
    %191 = vector.shape_cast %188 : vector<4x256xf32> to vector<1x4x256xf32>
    tpu.vector_store %arg6[%c1_168, %c0_169, %c0_170], %191 {strides = array<i32>} : memref<2x4x256xf32, #tpu.memory_space<vmem>>, vector<1x4x256xf32>,
    return
  }
  func.func @transform_0(%arg0: i32) -> (i32, i32, i32) {
    %c0_i32 = arith.constant 0 : i32
    %c0_i32_0 = arith.constant 0 : i32
    %c0_i32_1 = arith.constant 0 : i32
    %c0_i32_2 = arith.constant 0 : i32
    return %c0_i32, %c0_i32_0, %c0_i32_1 : i32, i32, i32
  }
  func.func @transform_1(%arg0: i32) -> (i32, i32) {
    %c0_i32 = arith.constant 0 : i32
    %c0_i32_0 = arith.constant 0 : i32
    %c0_i32_1 = arith.constant 0 : i32
    return %c0_i32, %c0_i32_0 : i32, i32
  }
  func.func @transform_2(%arg0: i32) -> (i32, i32) {
    %c0_i32 = arith.constant 0 : i32
    %c0_i32_0 = arith.constant 0 : i32
    %c0_i32_1 = arith.constant 0 : i32
    return %c0_i32, %c0_i32_0 : i32, i32
  }
  func.func @transform_3(%arg0: i32) -> (i32, i32) {
    %c0_i32 = arith.constant 0 : i32
    %c0_i32_0 = arith.constant 0 : i32
    %c0_i32_1 = arith.constant 0 : i32
    return %c0_i32, %c0_i32_0 : i32, i32
  }
  func.func @transform_4(%arg0: i32) -> (i32, i32) {
    %c0_i32 = arith.constant 0 : i32
    %c0_i32_0 = arith.constant 0 : i32
    %c0_i32_1 = arith.constant 0 : i32
    return %c0_i32, %c0_i32_0 : i32, i32
  }
  func.func @transform_5(%arg0: i32) -> (i32, i32, i32) {
    %c0_i32 = arith.constant 0 : i32
    %c0_i32_0 = arith.constant 0 : i32
    %c0_i32_1 = arith.constant 0 : i32
    %c0_i32_2 = arith.constant 0 : i32
    return %c0_i32, %c0_i32_0, %c0_i32_1 : i32, i32, i32
  }
}

</mosaic_0001>

<llo_original>
// kernel: tpu_custom_call.1
$region0: #{tpu_custom_call.1}
  #allocation0 [shape = 'u32[]', space=smem, size = 0x4, offset = 0x4, fixed_abs, tag = 'smem constant byte address 0x4 - core index']
  #allocation1 [shape = 'u32[144,128]{1,0:T(1,128)}', space=vmem, size = 0x12000, scoped, tag = 'internal scratch']
  #allocation2 [shape = 'f32[8,580]{1,0:T(8,128)}', space=vmem, size = 0x5000, scoped, tag = 'scratch operand']
  #allocation3 [shape = 'f32[72,512]{1,0:T(8,128)}', space=vmem, size = 0x24000, scoped, tag = 'scratch operand']
  %s0 = inlined_call_operand.hbm [shape: f32[2,4,256], index: 0, kind: input, shape index: {}]
  %s1 = inlined_call_operand.vmem [shape: f32[3,72], index: 1, kind: input, shape index: {}]
  %s2 = inlined_call_operand.vmem [shape: f32[3,1], index: 2, kind: input, shape index: {}]
  %s3 = inlined_call_operand.vmem [shape: f32[4,72], index: 3, kind: input, shape index: {}]
  %s4 = inlined_call_operand.vmem [shape: f32[4,1], index: 4, kind: input, shape index: {}]
  %s5 = inlined_call_operand.hbm [shape: f32[2,4,256], index: 5, kind: output, shape index: {}]
  %s6 = sld [smem:[#allocation0]]
  $region34: #{tpu_custom_call.1} parent=0
    _
  %s8 = ssub.s32 1, %s6
  %s9 = scalar_select 0, %s8, %s6
  $region1: #{tpu_custom_call.1} parent=0
    #allocation4 [shape = 'u8[8192]{0}', space=vmem, size = 0x2000, scoped, tag = 'input window, operand 0, single buffered']
    #allocation5 [shape = 's32[1]{0}', space=sflag, size = 0x4, scoped, tag = 'scoped memory for tpu_custom_call.1']
    #allocation6 [shape = 's32[1]{0}', space=sflag, size = 0x4, scoped, tag = 'scoped memory for tpu_custom_call.1']
    #allocation7 [shape = 'u8[8192]{0}', space=vmem, size = 0x2000, scoped, tag = 'output window, operand 0, single buffered']
    %10 = vsyncpa [#allocation5], 0
    %11 = vsyncpa [#allocation6], 0
    // Predicated region
    $region2: #{tpu_custom_call.1} parent=1 // pred_check
      _
    $region3: #{tpu_custom_call.1} parent=1 // pred_check_branch
      %13 = sbr.rel (0) target = $region5
    $region4: #{tpu_custom_call.1} parent=1 // pred_region
      %s15 = ssub.s32 256, 256
      %16 = vsyncadd [#allocation5], %s15
      %s17 = sshll.u32 [#allocation4], 4
      %s18 = int_to_ptr.vmem [resolvable:$true] %s17
      %23 = dma.hbm_to_vmem [thread:$0]  %s0, 256, %s18, [#allocation5], 128, 128, 8
    $region5: #{tpu_custom_call.1} parent=1 // pred_fallthru
      _
    // Predicated region
    $region6: #{tpu_custom_call.1} parent=1 // pred_check
      _
    $region7: #{tpu_custom_call.1} parent=1 // pred_check_branch
      %25 = sbr.rel (0) target = $region9
    $region8: #{tpu_custom_call.1} parent=1 // pred_region
      _
    $region9: #{tpu_custom_call.1} parent=1 // pred_fallthru
      _
    // Predicated region
    $region10: #{tpu_custom_call.1} parent=1 // pred_check
      _
    $region11: #{tpu_custom_call.1} parent=1 // pred_check_branch
      %27 = sbr.rel (0) target = $region13
    $region12: #{tpu_custom_call.1} parent=1 // pred_region
      _
    $region13: #{tpu_custom_call.1} parent=1 // pred_fallthru
      _
    // Predicated region
    $region14: #{tpu_custom_call.1} parent=1 // pred_check
      _
    $region15: #{tpu_custom_call.1} parent=1 // pred_check_branch
      %29 = sbr.rel (0) target = $region17
    $region16: #{tpu_custom_call.1} parent=1 // pred_region
      _
    $region17: #{tpu_custom_call.1} parent=1 // pred_fallthru
      _
    // Predicated region
    $region18: #{tpu_custom_call.1} parent=1 // pred_check
      _
    $region19: #{tpu_custom_call.1} parent=1 // pred_check_branch
      %31 = sbr.rel (0) target = $region21
    $region20: #{tpu_custom_call.1} parent=1 // pred_region
      _
    $region21: #{tpu_custom_call.1} parent=1 // pred_fallthru
      _
    // Predicated region
    $region22: #{tpu_custom_call.1} parent=1 // pred_check
      _
    $region23: #{tpu_custom_call.1} parent=1 // pred_check_branch
      %33 = sbr.rel (0) target = $region25
    $region24: #{tpu_custom_call.1} parent=1 // pred_region
      %34 = dma.done [#allocation5], 256
    $region25: #{tpu_custom_call.1} parent=1 // pred_fallthru
      _
    %v35 = vlaneseq
    %v36 = vand.u32 %v35, 127
    %v37 = vadd.s32 %v36, 128
    %vm38 = vcmp.lt.s32.totalorder %v36, 0
    %v39 = vsub.s32 0, %v36
    %v40 = vsel %vm38, %v39, %v36
    %v41 = vshrl.u32 %v40, 4
    %v42 = vand.u32 %v40, 15
    %v43 = vsub.s32 0, %v42
    %v44 = vsel %vm38, %v43, %v42
    %vm45 = vcmp.lt.s32.totalorder %v37, 0
    %v46 = vsub.s32 0, %v37
    %v47 = vsel %vm45, %v46, %v37
    %v48 = vshrl.u32 %v47, 4
    %v49 = vand.u32 %v47, 15
    %v50 = vsub.s32 0, %v49
    %v51 = vsel %vm45, %v50, %v49
    %vm52 = vcmp.ne.s32.totalorder %v44, 0
    %vm53 = vcmp.ne.s32.totalorder %v51, 0
    %vm54 = vcmp.lt.s32.totalorder %v44, 0
    %vm55 = vcmp.lt.s32.totalorder %v51, 0
    %vm56 = vmand %vm54, %vm52
    %vm57 = vmand %vm55, %vm53
    %v58 = vadd.s32 %v44, 16
    %v59 = vadd.s32 %v51, 16
    %v60 = vsel %vm56, %v58, %v44
    %v61 = vsel %vm57, %v59, %v51
    %vm62 = vcmp.ge.s32.totalorder %v60, 1
    %vm63 = vcmp.ge.s32.totalorder %v61, 1
    %v64 = vsel %vm62, 1, 0
    %v65 = vsel %vm63, 1, 0
    %v66 = vcvt.s32.f32 %v64
    %v67 = vcvt.s32.f32 %v65
    %vm68 = vcmp.le.s32.totalorder %v60, 14
    %vm69 = vcmp.le.s32.totalorder %v61, 14
    %v70 = vsel %vm68, 1, 0
    %v71 = vsel %vm69, 1, 0
    %v72 = vcvt.s32.f32 %v70
    %v73 = vcvt.s32.f32 %v71
    %vm74 = vcmask 138240
    %75 = vst.msk [vmem:[#allocation2] sm:$0xff] %vm74, 0.0
    %vm76 = vcmask 277640
    %77 = vst.msk [vmem:[#allocation2 + $0x10] sm:$0xff] %vm76, 0.0
    %vm78 = vcmask 1047691
    %79 = vst.msk [vmem:[#allocation2] sm:$0xf8] %vm78, 0.0
    %80 = vst [vmem:[#allocation2 + $0x8] sm:$0xf8] 0.0
    %vm81 = vcmask 138243
    %82 = vst.msk [vmem:[#allocation2 + $0x10] sm:$0xf8] %vm81, 0.0
    %vm83 = vcmask 417040
    %84 = vst.msk [vmem:[#allocation2 + $0x10] sm:$0xff] %vm83, 0.0
    %vm85 = vcmask 556440
    %86 = vst.msk [vmem:[#allocation2 + $0x20] sm:$0xff] %vm85, 0.0
    %vm87 = vcmask 1047963
    %88 = vst.msk [vmem:[#allocation2 + $0x10] sm:$0xf8] %vm87, 0.0
    %89 = vst [vmem:[#allocation2 + $0x18] sm:$0xf8] 0.0
    %vm90 = vcmask 416771
    %91 = vst.msk [vmem:[#allocation2 + $0x20] sm:$0xf8] %vm90, 0.0
    %v92 = vld [vmem:[#allocation4] sm:$0xff]
    %s93 = scalar_lea.vmem [#allocation4], 8
    %v94 = vld [vmem:[%s93] sm:$0xff]
    %v96 = vcombine.high %v92, %v92
    %97 = vrot.lane.b32.xlu0 %v92, 17
    %v98 = vpop.permute.xlu0 %97
    %99 = vrot.lane.b32.xlu0 %v96, 17
    %v100 = vpop.permute.xlu0 %99
    %v101 = vsel %vm74, %v98, %v100
    %vm105 = vcmask 1043592
    %106 = vst.msk [vmem:[#allocation2] sm:$0xf] %vm105, %v98
    %107 = vst [vmem:[#allocation2 + $0x8] sm:$0xf] %v101
    %vm108 = vcmask 134144
    %109 = vst.msk [vmem:[#allocation2 + $0x10] sm:$0xf] %vm108, %v100
    %v111 = vcombine.high %v94, %v94
    %112 = vrot.lane.b32.xlu0 %v94, 51
    %v113 = vpop.permute.xlu0 %112
    %114 = vrot.lane.b32.xlu0 %v111, 51
    %v115 = vpop.permute.xlu0 %114
    %vm116 = vcmask 416768
    %v117 = vsel %vm116, %v113, %v115
    %vm121 = vcmask 1043864
    %122 = vst.msk [vmem:[#allocation2 + $0x10] sm:$0xf] %vm121, %v113
    %123 = vst [vmem:[#allocation2 + $0x18] sm:$0xf] %v117
    %vm124 = vcmask 412672
    %125 = vst.msk [vmem:[#allocation2 + $0x20] sm:$0xf] %vm124, %v115
    %v126 = vld [vmem:[#allocation2] sm:$0xff]
    %v127 = vld [vmem:[#allocation2 + $0x8] sm:$0xff]
    %v128 = vmul.f32 %v126, %v66
    %v129 = vmul.f32 %v127, %v67
    %130 = vst [vmem:[#allocation3] sm:$0xff] %v128
    %131 = vst [vmem:[#allocation3 + $0x8] sm:$0xff] %v129
    %v132 = vld [vmem:[#allocation2 + $0x10] sm:$0xff]
    %v133 = vld [vmem:[#allocation2 + $0x18] sm:$0xff]
    %v134 = vld [vmem:[#allocation2 + $0x20] sm:$0xff]
    %137 = vrot.lane.b32.xlu0 %v66, 34
    %v138 = vpop.permute.xlu0 %137
    %139 = vrot.lane.b32.xlu0 %v67, 34
    %v140 = vpop.permute.xlu0 %139
    %vm141 = vcmask 277504
    %v142 = vsel %vm141, %v138, %v140
    %v146 = vmul.f32 %v132, %v138
    %v147 = vmul.f32 %v133, %v142
    %v148 = vmul.f32 %v134, %v140
    %152 = vrot.lane.b32.xlu0 %v146, 94
    %v153 = vpop.permute.xlu0 %152
    %154 = vrot.lane.b32.xlu0 %v147, 94
    %v155 = vpop.permute.xlu0 %154
    %156 = vrot.lane.b32.xlu0 %v148, 94
    %v157 = vpop.permute.xlu0 %156
    %vm158 = vcmask 769024
    %v159 = vsel %vm158, %v153, %v155
    %v160 = vsel %vm158, %v155, %v157
    %163 = vst [vmem:[#allocation3 + $0x10] sm:$0xff] %v159
    %164 = vst [vmem:[#allocation3 + $0x18] sm:$0xff] %v160
    %v165 = vld [vmem:[#allocation2] sm:$0xff]
    %v166 = vld [vmem:[#allocation2 + $0x8] sm:$0xff]
    %v167 = vld [vmem:[#allocation2 + $0x10] sm:$0xff]
    %171 = vrot.lane.b32.xlu0 %v165, 127
    %v172 = vpop.permute.xlu0 %171
    %173 = vrot.lane.b32.xlu0 %v166, 127
    %v174 = vpop.permute.xlu0 %173
    %175 = vrot.lane.b32.xlu0 %v167, 127
    %v176 = vpop.permute.xlu0 %175
    %vm177 = vcmask 1039360
    %v178 = vsel %vm177, %v172, %v174
    %v179 = vsel %vm177, %v174, %v176
    %182 = vst [vmem:[#allocation3 + $0x20] sm:$0xff] %v178
    %183 = vst [vmem:[#allocation3 + $0x28] sm:$0xff] %v179
    %v184 = vld [vmem:[#allocation2 + $0x10] sm:$0xff]
    %v185 = vld [vmem:[#allocation2 + $0x18] sm:$0xff]
    %v186 = vld [vmem:[#allocation2 + $0x20] sm:$0xff]
    %190 = vrot.lane.b32.xlu0 %v184, 93
    %v191 = vpop.permute.xlu0 %190
    %192 = vrot.lane.b32.xlu0 %v185, 93
    %v193 = vpop.permute.xlu0 %192
    %194 = vrot.lane.b32.xlu0 %v186, 93
    %v195 = vpop.permute.xlu0 %194
    %vm196 = vcmask 760832
    %v197 = vsel %vm196, %v191, %v193
    %v198 = vsel %vm196, %v193, %v195
    %201 = vst [vmem:[#allocation3 + $0x30] sm:$0xff] %v197
    %202 = vst [vmem:[#allocation3 + $0x38] sm:$0xff] %v198
    %v203 = vld [vmem:[#allocation2] sm:$0xff]
    %v204 = vld [vmem:[#allocation2 + $0x8] sm:$0xff]
    %v205 = vld [vmem:[#allocation2 + $0x10] sm:$0xff]
    %208 = vrot.lane.b32.xlu0 %v72, 2
    %v209 = vpop.permute.xlu0 %208
    %210 = vrot.lane.b32.xlu0 %v73, 2
    %v211 = vpop.permute.xlu0 %210
    %vm212 = vcmask 15360
    %v213 = vsel %vm212, %v209, %v211
    %v217 = vmul.f32 %v203, %v209
    %v218 = vmul.f32 %v204, %v213
    %v219 = vmul.f32 %v205, %v211
    %223 = vrot.lane.b32.xlu0 %v217, 126
    %v224 = vpop.permute.xlu0 %223
    %225 = vrot.lane.b32.xlu0 %v218, 126
    %v226 = vpop.permute.xlu0 %225
    %227 = vrot.lane.b32.xlu0 %v219, 126
    %v228 = vpop.permute.xlu0 %227
    %vm229 = vcmask 1031168
    %v230 = vsel %vm229, %v224, %v226
    %v231 = vsel %vm229, %v226, %v228
    %234 = vst [vmem:[#allocation3 + $0x40] sm:$0xff] %v230
    %235 = vst [vmem:[#allocation3 + $0x48] sm:$0xff] %v231
    %v236 = vld [vmem:[#allocation2 + $0x10] sm:$0xff]
    %v237 = vld [vmem:[#allocation2 + $0x18] sm:$0xff]
    %v238 = vld [vmem:[#allocation2 + $0x20] sm:$0xff]
    %239 = vrot.lane.b32.xlu0 %v72, 36
    %v240 = vpop.permute.xlu0 %239
    %241 = vrot.lane.b32.xlu0 %v73, 36
    %v242 = vpop.permute.xlu0 %241
    %vm243 = vcmask 293888
    %v244 = vsel %vm243, %v240, %v242
    %v248 = vmul.f32 %v236, %v240
    %v249 = vmul.f32 %v237, %v244
    %v250 = vmul.f32 %v238, %v242
    %254 = vrot.lane.b32.xlu0 %v248, 92
    %v255 = vpop.permute.xlu0 %254
    %256 = vrot.lane.b32.xlu0 %v249, 92
    %v257 = vpop.permute.xlu0 %256
    %258 = vrot.lane.b32.xlu0 %v250, 92
    %v259 = vpop.permute.xlu0 %258
    %vm260 = vcmask 752640
    %v261 = vsel %vm260, %v255, %v257
    %v262 = vsel %vm260, %v257, %v259
    %265 = vst [vmem:[#allocation3 + $0x50] sm:$0xff] %v261
    %266 = vst [vmem:[#allocation3 + $0x58] sm:$0xff] %v262
    %v267 = vld [vmem:[#allocation2] sm:$0xff]
    %v268 = vld [vmem:[#allocation2 + $0x8] sm:$0xff]
    %v269 = vld [vmem:[#allocation2 + $0x10] sm:$0xff]
    %270 = vrot.lane.b32.xlu0 %v66, 16
    %v271 = vpop.permute.xlu0 %270
    %272 = vrot.lane.b32.xlu0 %v67, 16
    %v273 = vpop.permute.xlu0 %272
    %vm274 = vcmask 130048
    %v275 = vsel %vm274, %v271, %v273
    %v279 = vmul.f32 %v267, %v271
    %v280 = vmul.f32 %v268, %v275
    %v281 = vmul.f32 %v269, %v273
    %285 = vrot.lane.b32.xlu0 %v279, 112
    %v286 = vpop.permute.xlu0 %285
    %287 = vrot.lane.b32.xlu0 %v280, 112
    %v288 = vpop.permute.xlu0 %287
    %289 = vrot.lane.b32.xlu0 %v281, 112
    %v290 = vpop.permute.xlu0 %289
    %vm291 = vcmask 916480
    %v292 = vsel %vm291, %v286, %v288
    %v293 = vsel %vm291, %v288, %v290
    %296 = vst [vmem:[#allocation3 + $0x60] sm:$0xff] %v292
    %297 = vst [vmem:[#allocation3 + $0x68] sm:$0xff] %v293
    %v298 = vld [vmem:[#allocation2 + $0x10] sm:$0xff]
    %v299 = vld [vmem:[#allocation2 + $0x18] sm:$0xff]
    %v300 = vld [vmem:[#allocation2 + $0x20] sm:$0xff]
    %301 = vrot.lane.b32.xlu0 %v66, 50
    %v302 = vpop.permute.xlu0 %301
    %303 = vrot.lane.b32.xlu0 %v67, 50
    %v304 = vpop.permute.xlu0 %303
    %vm305 = vcmask 408576
    %v306 = vsel %vm305, %v302, %v304
    %v310 = vmul.f32 %v298, %v302
    %v311 = vmul.f32 %v299, %v306
    %v312 = vmul.f32 %v300, %v304
    %316 = vrot.lane.b32.xlu0 %v310, 78
    %v317 = vpop.permute.xlu0 %316
    %318 = vrot.lane.b32.xlu0 %v311, 78
    %v319 = vpop.permute.xlu0 %318
    %320 = vrot.lane.b32.xlu0 %v312, 78
    %v321 = vpop.permute.xlu0 %320
    %vm322 = vcmask 637952
    %v323 = vsel %vm322, %v317, %v319
    %v324 = vsel %vm322, %v319, %v321
    %327 = vst [vmem:[#allocation3 + $0x70] sm:$0xff] %v323
    %328 = vst [vmem:[#allocation3 + $0x78] sm:$0xff] %v324
    %v329 = vld [vmem:[#allocation2] sm:$0xff]
    %v330 = vld [vmem:[#allocation2 + $0x8] sm:$0xff]
    %v331 = vld [vmem:[#allocation2 + $0x10] sm:$0xff]
    %335 = vrot.lane.b32.xlu0 %v329, 111
    %v336 = vpop.permute.xlu0 %335
    %337 = vrot.lane.b32.xlu0 %v330, 111
    %v338 = vpop.permute.xlu0 %337
    %339 = vrot.lane.b32.xlu0 %v331, 111
    %v340 = vpop.permute.xlu0 %339
    %vm341 = vcmask 908288
    %v342 = vsel %vm341, %v336, %v338
    %v343 = vsel %vm341, %v338, %v340
    %346 = vst [vmem:[#allocation3 + $0x80] sm:$0xff] %v342
    %347 = vst [vmem:[#allocation3 + $0x88] sm:$0xff] %v343
    %v348 = vld [vmem:[#allocation2 + $0x10] sm:$0xff]
    %v349 = vld [vmem:[#allocation2 + $0x18] sm:$0xff]
    %v350 = vld [vmem:[#allocation2 + $0x20] sm:$0xff]
    %354 = vrot.lane.b32.xlu0 %v348, 77
    %v355 = vpop.permute.xlu0 %354
    %356 = vrot.lane.b32.xlu0 %v349, 77
    %v357 = vpop.permute.xlu0 %356
    %358 = vrot.lane.b32.xlu0 %v350, 77
    %v359 = vpop.permute.xlu0 %358
    %vm360 = vcmask 629760
    %v361 = vsel %vm360, %v355, %v357
    %v362 = vsel %vm360, %v357, %v359
    %365 = vst [vmem:[#allocation3 + $0x90] sm:$0xff] %v361
    %366 = vst [vmem:[#allocation3 + $0x98] sm:$0xff] %v362
    %v367 = vld [vmem:[#allocation2] sm:$0xff]
    %v368 = vld [vmem:[#allocation2 + $0x8] sm:$0xff]
    %v369 = vld [vmem:[#allocation2 + $0x10] sm:$0xff]
    %370 = vrot.lane.b32.xlu0 %v72, 18
    %v371 = vpop.permute.xlu0 %370
    %372 = vrot.lane.b32.xlu0 %v73, 18
    %v373 = vpop.permute.xlu0 %372
    %vm374 = vcmask 146432
    %v375 = vsel %vm374, %v371, %v373
    %v379 = vmul.f32 %v367, %v371
    %v380 = vmul.f32 %v368, %v375
    %v381 = vmul.f32 %v369, %v373
    %385 = vrot.lane.b32.xlu0 %v379, 110
    %v386 = vpop.permute.xlu0 %385
    %387 = vrot.lane.b32.xlu0 %v380, 110
    %v388 = vpop.permute.xlu0 %387
    %389 = vrot.lane.b32.xlu0 %v381, 110
    %v390 = vpop.permute.xlu0 %389
    %vm391 = vcmask 900096
    %v392 = vsel %vm391, %v386, %v388
    %v393 = vsel %vm391, %v388, %v390
    %396 = vst [vmem:[#allocation3 + $0xa0] sm:$0xff] %v392
    %397 = vst [vmem:[#allocation3 + $0xa8] sm:$0xff] %v393
    %v398 = vld [vmem:[#allocation2 + $0x10] sm:$0xff]
    %v399 = vld [vmem:[#allocation2 + $0x18] sm:$0xff]
    %v400 = vld [vmem:[#allocation2 + $0x20] sm:$0xff]
    %401 = vrot.lane.b32.xlu0 %v72, 52
    %v402 = vpop.permute.xlu0 %401
    %403 = vrot.lane.b32.xlu0 %v73, 52
    %v404 = vpop.permute.xlu0 %403
    %vm405 = vcmask 424960
    %v406 = vsel %vm405, %v402, %v404
    %v410 = vmul.f32 %v398, %v402
    %v411 = vmul.f32 %v399, %v406
    %v412 = vmul.f32 %v400, %v404
    %416 = vrot.lane.b32.xlu0 %v410, 76
    %v417 = vpop.permute.xlu0 %416
    %418 = vrot.lane.b32.xlu0 %v411, 76
    %v419 = vpop.permute.xlu0 %418
    %420 = vrot.lane.b32.xlu0 %v412, 76
    %v421 = vpop.permute.xlu0 %420
    %vm422 = vcmask 621568
    %v423 = vsel %vm422, %v417, %v419
    %v424 = vsel %vm422, %v419, %v421
    %427 = vst [vmem:[#allocation3 + $0xb0] sm:$0xff] %v423
    %428 = vst [vmem:[#allocation3 + $0xb8] sm:$0xff] %v424
    %v429 = vld [vmem:[#allocation2] sm:$0xff]
    %v430 = vld [vmem:[#allocation2 + $0x8] sm:$0xff]
    %v431 = vld [vmem:[#allocation2 + $0x10] sm:$0xff]
    %432 = vrot.lane.b32.xlu0 %v66, 32
    %v433 = vpop.permute.xlu0 %432
    %434 = vrot.lane.b32.xlu0 %v67, 32
    %v435 = vpop.permute.xlu0 %434
    %vm436 = vcmask 261120
    %v437 = vsel %vm436, %v433, %v435
    %v441 = vmul.f32 %v429, %v433
    %v442 = vmul.f32 %v430, %v437
    %v443 = vmul.f32 %v431, %v435
    %447 = vrot.lane.b32.xlu0 %v441, 96
    %v448 = vpop.permute.xlu0 %447
    %449 = vrot.lane.b32.xlu0 %v442, 96
    %v450 = vpop.permute.xlu0 %449
    %451 = vrot.lane.b32.xlu0 %v443, 96
    %v452 = vpop.permute.xlu0 %451
    %vm453 = vcmask 785408
    %v454 = vsel %vm453, %v448, %v450
    %v455 = vsel %vm453, %v450, %v452
    %458 = vst [vmem:[#allocation3 + $0xc0] sm:$0xff] %v454
    %459 = vst [vmem:[#allocation3 + $0xc8] sm:$0xff] %v455
    %v460 = vld [vmem:[#allocation2 + $0x10] sm:$0xff]
    %v461 = vld [vmem:[#allocation2 + $0x18] sm:$0xff]
    %v462 = vld [vmem:[#allocation2 + $0x20] sm:$0xff]
    %463 = vrot.lane.b32.xlu0 %v66, 66
    %v464 = vpop.permute.xlu0 %463
    %465 = vrot.lane.b32.xlu0 %v67, 66
    %v466 = vpop.permute.xlu0 %465
    %vm467 = vcmask 539648
    %v468 = vsel %vm467, %v464, %v466
    %v472 = vmul.f32 %v460, %v464
    %v473 = vmul.f32 %v461, %v468
    %v474 = vmul.f32 %v462, %v466
    %478 = vrot.lane.b32.xlu0 %v472, 62
    %v479 = vpop.permute.xlu0 %478
    %480 = vrot.lane.b32.xlu0 %v473, 62
    %v481 = vpop.permute.xlu0 %480
    %482 = vrot.lane.b32.xlu0 %v474, 62
    %v483 = vpop.permute.xlu0 %482
    %vm484 = vcmask 506880
    %v485 = vsel %vm484, %v479, %v481
    %v486 = vsel %vm484, %v481, %v483
    %489 = vst [vmem:[#allocation3 + $0xd0] sm:$0xff] %v485
    %490 = vst [vmem:[#allocation3 + $0xd8] sm:$0xff] %v486
    %v491 = vld [vmem:[#allocation2] sm:$0xff]
    %v492 = vld [vmem:[#allocation2 + $0x8] sm:$0xff]
    %v493 = vld [vmem:[#allocation2 + $0x10] sm:$0xff]
    %497 = vrot.lane.b32.xlu0 %v491, 95
    %v498 = vpop.permute.xlu0 %497
    %499 = vrot.lane.b32.xlu0 %v492, 95
    %v500 = vpop.permute.xlu0 %499
    %501 = vrot.lane.b32.xlu0 %v493, 95
    %v502 = vpop.permute.xlu0 %501
    %vm503 = vcmask 777216
    %v504 = vsel %vm503, %v498, %v500
    %v505 = vsel %vm503, %v500, %v502
    %508 = vst [vmem:[#allocation3 + $0xe0] sm:$0xff] %v504
    %509 = vst [vmem:[#allocation3 + $0xe8] sm:$0xff] %v505
    %v510 = vld [vmem:[#allocation2 + $0x10] sm:$0xff]
    %v511 = vld [vmem:[#allocation2 + $0x18] sm:$0xff]
    %v512 = vld [vmem:[#allocation2 + $0x20] sm:$0xff]
    %516 = vrot.lane.b32.xlu0 %v510, 61
    %v517 = vpop.permute.xlu0 %516
    %518 = vrot.lane.b32.xlu0 %v511, 61
    %v519 = vpop.permute.xlu0 %518
    %520 = vrot.lane.b32.xlu0 %v512, 61
    %v521 = vpop.permute.xlu0 %520
    %vm522 = vcmask 498688
    %v523 = vsel %vm522, %v517, %v519
    %v524 = vsel %vm522, %v519, %v521
    %527 = vst [vmem:[#allocation3 + $0xf0] sm:$0xff] %v523
    %528 = vst [vmem:[#allocation3 + $0xf8] sm:$0xff] %v524
    %v529 = vld [vmem:[#allocation2] sm:$0xff]
    %v530 = vld [vmem:[#allocation2 + $0x8] sm:$0xff]
    %v531 = vld [vmem:[#allocation2 + $0x10] sm:$0xff]
    %532 = vrot.lane.b32.xlu0 %v72, 34
    %v533 = vpop.permute.xlu0 %532
    %534 = vrot.lane.b32.xlu0 %v73, 34
    %v535 = vpop.permute.xlu0 %534
    %v536 = vsel %vm141, %v533, %v535
    %v540 = vmul.f32 %v529, %v533
    %v541 = vmul.f32 %v530, %v536
    %v542 = vmul.f32 %v531, %v535
    %546 = vrot.lane.b32.xlu0 %v540, 94
    %v547 = vpop.permute.xlu0 %546
    %548 = vrot.lane.b32.xlu0 %v541, 94
    %v549 = vpop.permute.xlu0 %548
    %550 = vrot.lane.b32.xlu0 %v542, 94
    %v551 = vpop.permute.xlu0 %550
    %v552 = vsel %vm158, %v547, %v549
    %v553 = vsel %vm158, %v549, %v551
    %556 = vst [vmem:[#allocation3 + $0x100] sm:$0xff] %v552
    %557 = vst [vmem:[#allocation3 + $0x108] sm:$0xff] %v553
    %v558 = vld [vmem:[#allocation2 + $0x10] sm:$0xff]
    %v559 = vld [vmem:[#allocation2 + $0x18] sm:$0xff]
    %v560 = vld [vmem:[#allocation2 + $0x20] sm:$0xff]
    %561 = vrot.lane.b32.xlu0 %v72, 68
    %v562 = vpop.permute.xlu0 %561
    %563 = vrot.lane.b32.xlu0 %v73, 68
    %v564 = vpop.permute.xlu0 %563
    %vm565 = vcmask 556032
    %v566 = vsel %vm565, %v562, %v564
    %v570 = vmul.f32 %v558, %v562
    %v571 = vmul.f32 %v559, %v566
    %v572 = vmul.f32 %v560, %v564
    %576 = vrot.lane.b32.xlu0 %v570, 60
    %v577 = vpop.permute.xlu0 %576
    %578 = vrot.lane.b32.xlu0 %v571, 60
    %v579 = vpop.permute.xlu0 %578
    %580 = vrot.lane.b32.xlu0 %v572, 60
    %v581 = vpop.permute.xlu0 %580
    %vm582 = vcmask 490496
    %v583 = vsel %vm582, %v577, %v579
    %v584 = vsel %vm582, %v579, %v581
    %587 = vst [vmem:[#allocation3 + $0x110] sm:$0xff] %v583
    %588 = vst [vmem:[#allocation3 + $0x118] sm:$0xff] %v584
    %v589 = vld [vmem:[%s1] sm:$0x7]
    %v590 = vld [vmem:[#allocation3] sm:$0xff]
    %v591 = vld [vmem:[#allocation3 + $0x8] sm:$0xff]
    %v592 = vld [vmem:[#allocation3 + $0x10] sm:$0xff]
    %v593 = vld [vmem:[#allocation3 + $0x18] sm:$0xff]
    %v594 = vld [vmem:[#allocation3 + $0x20] sm:$0xff]
    %v595 = vld [vmem:[#allocation3 + $0x28] sm:$0xff]
    %v596 = vld [vmem:[#allocation3 + $0x30] sm:$0xff]
    %v597 = vld [vmem:[#allocation3 + $0x38] sm:$0xff]
    %v598 = vld [vmem:[#allocation3 + $0x40] sm:$0xff]
    %v599 = vld [vmem:[#allocation3 + $0x48] sm:$0xff]
    %v600 = vld [vmem:[#allocation3 + $0x50] sm:$0xff]
    %v601 = vld [vmem:[#allocation3 + $0x58] sm:$0xff]
    %v602 = vld [vmem:[#allocation3 + $0x60] sm:$0xff]
    %v603 = vld [vmem:[#allocation3 + $0x68] sm:$0xff]
    %v604 = vld [vmem:[#allocation3 + $0x70] sm:$0xff]
    %v605 = vld [vmem:[#allocation3 + $0x78] sm:$0xff]
    %v606 = vld [vmem:[#allocation3 + $0x80] sm:$0xff]
    %v607 = vld [vmem:[#allocation3 + $0x88] sm:$0xff]
    %v608 = vld [vmem:[#allocation3 + $0x90] sm:$0xff]
    %v609 = vld [vmem:[#allocation3 + $0x98] sm:$0xff]
    %v610 = vld [vmem:[#allocation3 + $0xa0] sm:$0xff]
    %v611 = vld [vmem:[#allocation3 + $0xa8] sm:$0xff]
    %v612 = vld [vmem:[#allocation3 + $0xb0] sm:$0xff]
    %v613 = vld [vmem:[#allocation3 + $0xb8] sm:$0xff]
    %v614 = vld [vmem:[#allocation3 + $0xc0] sm:$0xff]
    %v615 = vld [vmem:[#allocation3 + $0xc8] sm:$0xff]
    %v616 = vld [vmem:[#allocation3 + $0xd0] sm:$0xff]
    %v617 = vld [vmem:[#allocation3 + $0xd8] sm:$0xff]
    %v618 = vld [vmem:[#allocation3 + $0xe0] sm:$0xff]
    %v619 = vld [vmem:[#allocation3 + $0xe8] sm:$0xff]
    %v620 = vld [vmem:[#allocation3 + $0xf0] sm:$0xff]
    %v621 = vld [vmem:[#allocation3 + $0xf8] sm:$0xff]
    %v622 = vld [vmem:[#allocation3 + $0x100] sm:$0xff]
    %v623 = vld [vmem:[#allocation3 + $0x108] sm:$0xff]
    %v624 = vld [vmem:[#allocation3 + $0x110] sm:$0xff]
    %v625 = vld [vmem:[#allocation3 + $0x118] sm:$0xff]
    %v626 = vld [vmem:[%s2] sm:$0x7]
    %628 = vset.pattern.permute.xlu0 0
    %629 = vperm.xlu0 %628, %v626
    %v630 = vpop.permute.xlu0 %629
    %vm632 = vcmask 588800
    %v634 = vsel %vm632, %v589, 0
    %636 = vmatprep.subr.mxu0 %v591
    %637 = vmatpush1.msra.mxu0 %v590
    %638 = vmatprep.subr.mxu0 %v595
    %639 = vmatpush1.msra.mxu0 %v594
    %640 = vmatprep.subr.mxu0 %v599
    %641 = vmatpush1.msra.mxu0 %v598
    %642 = vmatprep.subr.mxu0 %v603
    %643 = vmatpush1.msra.mxu0 %v602
    %644 = vmatprep.subr.mxu0 %v607
    %645 = vmatpush1.msra.mxu0 %v606
    %646 = vmatprep.subr.mxu0 %v611
    %647 = vmatpush1.msra.mxu0 %v610
    %648 = vmatprep.subr.mxu0 %v615
    %649 = vmatpush1.msra.mxu0 %v614
    %650 = vmatprep.subr.mxu0 %v619
    %651 = vmatpush1.msra.mxu0 %v618
    %652 = vmatprep.subr.mxu0 %v623
    %653 = vmatpush1.msra.mxu0 %v622
    %654 = vmatprep.subr.mxu0 0.0
    %655 = vmatpush1.msra.mxu0 0.0
    %656 = vmatprep.subr.mxu0 0.0
    %657 = vmatpush1.msra.mxu0 0.0
    %658 = vmatprep.subr.mxu0 0.0
    %659 = vmatpush1.msra.mxu0 0.0
    %660 = vmatprep.subr.mxu0 0.0
    %661 = vmatpush1.msra.mxu0 0.0
    %662 = vmatprep.subr.mxu0 0.0
    %663 = vmatpush1.msra.mxu0 0.0
    %664 = vmatprep.subr.mxu0 0.0
    %665 = vmatpush1.msra.mxu0 0.0
    %666 = vmatprep.subr.mxu0 0.0
    %667 = vmatpush1.msra.mxu0 0.0
    %668 = vmatprep.subr.mxu0 0.0
    %669 = vmatpush1.msra.mxu0 0.0
    %670 = vmatprep.subr.mxu0 0.0
    %671 = vmatpush1.msra.mxu0 0.0
    %672 = vmatprep.subr.mxu0 0.0
    %673 = vmatpush1.msra.mxu0 0.0
    %674 = vmatprep.subr.mxu0 0.0
    %675 = vmatpush1.msra.mxu0 0.0
    %676 = vmatprep.subr.mxu0 0.0
    %677 = vmatpush1.msra.mxu0 0.0
    %678 = vmatprep.subr.mxu0 0.0
    %679 = vmatpush1.msra.mxu0 0.0
    %680 = vmatprep.subr.mxu0 0.0
    %681 = vmatpush1.msra.mxu0 0.0
    %682 = vmatprep.subr.mxu0 0.0
    %683 = vmatpush1.msra.mxu0 0.0
    %684 = vmatprep.subr.mxu0 0.0
    %685 = vmatpush1.msra.mxu0 0.0
    %686 = vmatprep.subr.mxu0 0.0
    %687 = vmatpush1.msra.mxu0 0.0
    %688 = vmatprep.subr.mxu0 0.0
    %689 = vmatpush1.msra.mxu0 0.0
    %690 = vmatprep.subr.mxu0 0.0
    %691 = vmatpush1.msra.mxu0 0.0
    %692 = vmatprep.subr.mxu0 0.0
    %693 = vmatpush1.msra.mxu0 0.0
    %694 = vmatprep.subr.mxu0 0.0
    %695 = vmatpush1.msra.mxu0 0.0
    %696 = vmatprep.subr.mxu0 0.0
    %697 = vmatpush1.msra.mxu0 0.0
    %698 = vmatprep.subr.mxu0 0.0
    %699 = vmatpush1.msra.mxu0 0.0
    %700 = vmatprep.mubr.f32.mxu0 0.0
    %701 = vmatmul.mubr.f32.gmra.mrb[0].mxu0 %v634
    %v702 = vpop.f32.mrb[0].mxu0
    %v703 = vadd.f32 %v630, %v702
    %v704 = vpop.f32.mrb[0].mxu0
    %v705 = vadd.f32 %v630, %v704
    %706 = vdwg.mxu0
    %707 = vmatprep.subr.mxu0 %v593
    %708 = vmatpush1.msra.mxu0 %v592
    %709 = vmatprep.subr.mxu0 %v597
    %710 = vmatpush1.msra.mxu0 %v596
    %711 = vmatprep.subr.mxu0 %v601
    %712 = vmatpush1.msra.mxu0 %v600
    %713 = vmatprep.subr.mxu0 %v605
    %714 = vmatpush1.msra.mxu0 %v604
    %715 = vmatprep.subr.mxu0 %v609
    %716 = vmatpush1.msra.mxu0 %v608
    %717 = vmatprep.subr.mxu0 %v613
    %718 = vmatpush1.msra.mxu0 %v612
    %719 = vmatprep.subr.mxu0 %v617
    %720 = vmatpush1.msra.mxu0 %v616
    %721 = vmatprep.subr.mxu0 %v621
    %722 = vmatpush1.msra.mxu0 %v620
    %723 = vmatprep.subr.mxu0 %v625
    %724 = vmatpush1.msra.mxu0 %v624
    %725 = vmatprep.subr.mxu0 0.0
    %726 = vmatpush1.msra.mxu0 0.0
    %727 = vmatprep.subr.mxu0 0.0
    %728 = vmatpush1.msra.mxu0 0.0
    %729 = vmatprep.subr.mxu0 0.0
    %730 = vmatpush1.msra.mxu0 0.0
    %731 = vmatprep.subr.mxu0 0.0
    %732 = vmatpush1.msra.mxu0 0.0
    %733 = vmatprep.subr.mxu0 0.0
    %734 = vmatpush1.msra.mxu0 0.0
    %735 = vmatprep.subr.mxu0 0.0
    %736 = vmatpush1.msra.mxu0 0.0
    %737 = vmatprep.subr.mxu0 0.0
    %738 = vmatpush1.msra.mxu0 0.0
    %739 = vmatprep.subr.mxu0 0.0
    %740 = vmatpush1.msra.mxu0 0.0
    %741 = vmatprep.subr.mxu0 0.0
    %742 = vmatpush1.msra.mxu0 0.0
    %743 = vmatprep.subr.mxu0 0.0
    %744 = vmatpush1.msra.mxu0 0.0
    %745 = vmatprep.subr.mxu0 0.0
    %746 = vmatpush1.msra.mxu0 0.0
    %747 = vmatprep.subr.mxu0 0.0
    %748 = vmatpush1.msra.mxu0 0.0
    %749 = vmatprep.subr.mxu0 0.0
    %750 = vmatpush1.msra.mxu0 0.0
    %751 = vmatprep.subr.mxu0 0.0
    %752 = vmatpush1.msra.mxu0 0.0
    %753 = vmatprep.subr.mxu0 0.0
    %754 = vmatpush1.msra.mxu0 0.0
    %755 = vmatprep.subr.mxu0 0.0
    %756 = vmatpush1.msra.mxu0 0.0
    %757 = vmatprep.subr.mxu0 0.0
    %758 = vmatpush1.msra.mxu0 0.0
    %759 = vmatprep.subr.mxu0 0.0
    %760 = vmatpush1.msra.mxu0 0.0
    %761 = vmatprep.subr.mxu0 0.0
    %762 = vmatpush1.msra.mxu0 0.0
    %763 = vmatprep.subr.mxu0 0.0
    %764 = vmatpush1.msra.mxu0 0.0
    %765 = vmatprep.subr.mxu0 0.0
    %766 = vmatpush1.msra.mxu0 0.0
    %767 = vmatprep.subr.mxu0 0.0
    %768 = vmatpush1.msra.mxu0 0.0
    %769 = vmatprep.subr.mxu0 0.0
    %770 = vmatpush1.msra.mxu0 0.0
    %771 = vmatprep.mubr.f32.mxu0 0.0
    %772 = vmatmul.mubr.f32.gmra.mrb[0].mxu0 %v634
    %v773 = vpop.f32.mrb[0].mxu0
    %v774 = vadd.f32 %v630, %v773
    %v775 = vpop.f32.mrb[0].mxu0
    %v776 = vadd.f32 %v630, %v775
    %777 = vdwg.mxu0
    %v778 = vmax.f32 %v703, 0.0
    %v779 = vmax.f32 %v705, 0.0
    %v780 = vmax.f32 %v774, 0.0
    %v781 = vmax.f32 %v776, 0.0
    %784 = vrot.lane.b32.xlu0 %v778, 17
    %v785 = vpop.permute.xlu0 %784
    %786 = vrot.lane.b32.xlu0 %v779, 17
    %v787 = vpop.permute.xlu0 %786
    %v788 = vsel %vm74, %v785, %v787
    %vm792 = vcmask 1042568
    %793 = vst.msk [vmem:[#allocation2] sm:$0x7] %vm792, %v785
    %794 = vst [vmem:[#allocation2 + $0x8] sm:$0x7] %v788
    %vm795 = vcmask 133120
    %796 = vst.msk [vmem:[#allocation2 + $0x10] sm:$0x7] %vm795, %v787
    %799 = vrot.lane.b32.xlu0 %v780, 51
    %v800 = vpop.permute.xlu0 %799
    %801 = vrot.lane.b32.xlu0 %v781, 51
    %v802 = vpop.permute.xlu0 %801
    %v803 = vsel %vm116, %v800, %v802
    %vm807 = vcmask 1042840
    %808 = vst.msk [vmem:[#allocation2 + $0x10] sm:$0x7] %vm807, %v800
    %809 = vst [vmem:[#allocation2 + $0x18] sm:$0x7] %v803
    %vm810 = vcmask 411648
    %811 = vst.msk [vmem:[#allocation2 + $0x20] sm:$0x7] %vm810, %v802
    %v812 = vld [vmem:[#allocation2] sm:$0xff]
    %v813 = vld [vmem:[#allocation2 + $0x8] sm:$0xff]
    %v814 = vmul.f32 %v812, %v66
    %v815 = vmul.f32 %v813, %v67
    %816 = vst [vmem:[#allocation3] sm:$0xff] %v814
    %817 = vst [vmem:[#allocation3 + $0x8] sm:$0xff] %v815
    %v818 = vld [vmem:[#allocation2 + $0x10] sm:$0xff]
    %v819 = vld [vmem:[#allocation2 + $0x18] sm:$0xff]
    %v820 = vld [vmem:[#allocation2 + $0x20] sm:$0xff]
    %v821 = vmul.f32 %v818, %v138
    %v822 = vmul.f32 %v819, %v142
    %v823 = vmul.f32 %v820, %v140
    %827 = vrot.lane.b32.xlu0 %v821, 94
    %v828 = vpop.permute.xlu0 %827
    %829 = vrot.lane.b32.xlu0 %v822, 94
    %v830 = vpop.permute.xlu0 %829
    %831 = vrot.lane.b32.xlu0 %v823, 94
    %v832 = vpop.permute.xlu0 %831
    %v833 = vsel %vm158, %v828, %v830
    %v834 = vsel %vm158, %v830, %v832
    %837 = vst [vmem:[#allocation3 + $0x10] sm:$0xff] %v833
    %838 = vst [vmem:[#allocation3 + $0x18] sm:$0xff] %v834
    %v839 = vld [vmem:[#allocation2] sm:$0xff]
    %v840 = vld [vmem:[#allocation2 + $0x8] sm:$0xff]
    %v841 = vld [vmem:[#allocation2 + $0x10] sm:$0xff]
    %845 = vrot.lane.b32.xlu0 %v839, 127
    %v846 = vpop.permute.xlu0 %845
    %847 = vrot.lane.b32.xlu0 %v840, 127
    %v848 = vpop.permute.xlu0 %847
    %849 = vrot.lane.b32.xlu0 %v841, 127
    %v850 = vpop.permute.xlu0 %849
    %v851 = vsel %vm177, %v846, %v848
    %v852 = vsel %vm177, %v848, %v850
    %855 = vst [vmem:[#allocation3 + $0x20] sm:$0xff] %v851
    %856 = vst [vmem:[#allocation3 + $0x28] sm:$0xff] %v852
    %v857 = vld [vmem:[#allocation2 + $0x10] sm:$0xff]
    %v858 = vld [vmem:[#allocation2 + $0x18] sm:$0xff]
    %v859 = vld [vmem:[#allocation2 + $0x20] sm:$0xff]
    %863 = vrot.lane.b32.xlu0 %v857, 93
    %v864 = vpop.permute.xlu0 %863
    %865 = vrot.lane.b32.xlu0 %v858, 93
    %v866 = vpop.permute.xlu0 %865
    %867 = vrot.lane.b32.xlu0 %v859, 93
    %v868 = vpop.permute.xlu0 %867
    %v869 = vsel %vm196, %v864, %v866
    %v870 = vsel %vm196, %v866, %v868
    %873 = vst [vmem:[#allocation3 + $0x30] sm:$0xff] %v869
    %874 = vst [vmem:[#allocation3 + $0x38] sm:$0xff] %v870
    %v875 = vld [vmem:[#allocation2] sm:$0xff]
    %v876 = vld [vmem:[#allocation2 + $0x8] sm:$0xff]
    %v877 = vld [vmem:[#allocation2 + $0x10] sm:$0xff]
    %v878 = vmul.f32 %v875, %v209
    %v879 = vmul.f32 %v876, %v213
    %v880 = vmul.f32 %v877, %v211
    %884 = vrot.lane.b32.xlu0 %v878, 126
    %v885 = vpop.permute.xlu0 %884
    %886 = vrot.lane.b32.xlu0 %v879, 126
    %v887 = vpop.permute.xlu0 %886
    %888 = vrot.lane.b32.xlu0 %v880, 126
    %v889 = vpop.permute.xlu0 %888
    %v890 = vsel %vm229, %v885, %v887
    %v891 = vsel %vm229, %v887, %v889
    %894 = vst [vmem:[#allocation3 + $0x40] sm:$0xff] %v890
    %895 = vst [vmem:[#allocation3 + $0x48] sm:$0xff] %v891
    %v896 = vld [vmem:[#allocation2 + $0x10] sm:$0xff]
    %v897 = vld [vmem:[#allocation2 + $0x18] sm:$0xff]
    %v898 = vld [vmem:[#allocation2 + $0x20] sm:$0xff]
    %v899 = vmul.f32 %v896, %v240
    %v900 = vmul.f32 %v897, %v244
    %v901 = vmul.f32 %v898, %v242
    %905 = vrot.lane.b32.xlu0 %v899, 92
    %v906 = vpop.permute.xlu0 %905
    %907 = vrot.lane.b32.xlu0 %v900, 92
    %v908 = vpop.permute.xlu0 %907
    %909 = vrot.lane.b32.xlu0 %v901, 92
    %v910 = vpop.permute.xlu0 %909
    %v911 = vsel %vm260, %v906, %v908
    %v912 = vsel %vm260, %v908, %v910
    %915 = vst [vmem:[#allocation3 + $0x50] sm:$0xff] %v911
    %916 = vst [vmem:[#allocation3 + $0x58] sm:$0xff] %v912
    %v917 = vld [vmem:[#allocation2] sm:$0xff]
    %v918 = vld [vmem:[#allocation2 + $0x8] sm:$0xff]
    %v919 = vld [vmem:[#allocation2 + $0x10] sm:$0xff]
    %v920 = vmul.f32 %v917, %v271
    %v921 = vmul.f32 %v918, %v275
    %v922 = vmul.f32 %v919, %v273
    %926 = vrot.lane.b32.xlu0 %v920, 112
    %v927 = vpop.permute.xlu0 %926
    %928 = vrot.lane.b32.xlu0 %v921, 112
    %v929 = vpop.permute.xlu0 %928
    %930 = vrot.lane.b32.xlu0 %v922, 112
    %v931 = vpop.permute.xlu0 %930
    %v932 = vsel %vm291, %v927, %v929
    %v933 = vsel %vm291, %v929, %v931
    %936 = vst [vmem:[#allocation3 + $0x60] sm:$0xff] %v932
    %937 = vst [vmem:[#allocation3 + $0x68] sm:$0xff] %v933
    %v938 = vld [vmem:[#allocation2 + $0x10] sm:$0xff]
    %v939 = vld [vmem:[#allocation2 + $0x18] sm:$0xff]
    %v940 = vld [vmem:[#allocation2 + $0x20] sm:$0xff]
    %v941 = vmul.f32 %v938, %v302
    %v942 = vmul.f32 %v939, %v306
    %v943 = vmul.f32 %v940, %v304
    %947 = vrot.lane.b32.xlu0 %v941, 78
    %v948 = vpop.permute.xlu0 %947
    %949 = vrot.lane.b32.xlu0 %v942, 78
    %v950 = vpop.permute.xlu0 %949
    %951 = vrot.lane.b32.xlu0 %v943, 78
    %v952 = vpop.permute.xlu0 %951
    %v953 = vsel %vm322, %v948, %v950
    %v954 = vsel %vm322, %v950, %v952
    %957 = vst [vmem:[#allocation3 + $0x70] sm:$0xff] %v953
    %958 = vst [vmem:[#allocation3 + $0x78] sm:$0xff] %v954
    %v959 = vld [vmem:[#allocation2] sm:$0xff]
    %v960 = vld [vmem:[#allocation2 + $0x8] sm:$0xff]
    %v961 = vld [vmem:[#allocation2 + $0x10] sm:$0xff]
    %965 = vrot.lane.b32.xlu0 %v959, 111
    %v966 = vpop.permute.xlu0 %965
    %967 = vrot.lane.b32.xlu0 %v960, 111
    %v968 = vpop.permute.xlu0 %967
    %969 = vrot.lane.b32.xlu0 %v961, 111
    %v970 = vpop.permute.xlu0 %969
    %v971 = vsel %vm341, %v966, %v968
    %v972 = vsel %vm341, %v968, %v970
    %975 = vst [vmem:[#allocation3 + $0x80] sm:$0xff] %v971
    %976 = vst [vmem:[#allocation3 + $0x88] sm:$0xff] %v972
    %v977 = vld [vmem:[#allocation2 + $0x10] sm:$0xff]
    %v978 = vld [vmem:[#allocation2 + $0x18] sm:$0xff]
    %v979 = vld [vmem:[#allocation2 + $0x20] sm:$0xff]
    %983 = vrot.lane.b32.xlu0 %v977, 77
    %v984 = vpop.permute.xlu0 %983
    %985 = vrot.lane.b32.xlu0 %v978, 77
    %v986 = vpop.permute.xlu0 %985
    %987 = vrot.lane.b32.xlu0 %v979, 77
    %v988 = vpop.permute.xlu0 %987
    %v989 = vsel %vm360, %v984, %v986
    %v990 = vsel %vm360, %v986, %v988
    %993 = vst [vmem:[#allocation3 + $0x90] sm:$0xff] %v989
    %994 = vst [vmem:[#allocation3 + $0x98] sm:$0xff] %v990
    %v995 = vld [vmem:[#allocation2] sm:$0xff]
    %v996 = vld [vmem:[#allocation2 + $0x8] sm:$0xff]
    %v997 = vld [vmem:[#allocation2 + $0x10] sm:$0xff]
    %v998 = vmul.f32 %v995, %v371
    %v999 = vmul.f32 %v996, %v375
    %v1000 = vmul.f32 %v997, %v373
    %1004 = vrot.lane.b32.xlu0 %v998, 110
    %v1005 = vpop.permute.xlu0 %1004
    %1006 = vrot.lane.b32.xlu0 %v999, 110
    %v1007 = vpop.permute.xlu0 %1006
    %1008 = vrot.lane.b32.xlu0 %v1000, 110
    %v1009 = vpop.permute.xlu0 %1008
    %v1010 = vsel %vm391, %v1005, %v1007
    %v1011 = vsel %vm391, %v1007, %v1009
    %1014 = vst [vmem:[#allocation3 + $0xa0] sm:$0xff] %v1010
    %1015 = vst [vmem:[#allocation3 + $0xa8] sm:$0xff] %v1011
    %v1016 = vld [vmem:[#allocation2 + $0x10] sm:$0xff]
    %v1017 = vld [vmem:[#allocation2 + $0x18] sm:$0xff]
    %v1018 = vld [vmem:[#allocation2 + $0x20] sm:$0xff]
    %v1019 = vmul.f32 %v1016, %v402
    %v1020 = vmul.f32 %v1017, %v406
    %v1021 = vmul.f32 %v1018, %v404
    %1025 = vrot.lane.b32.xlu0 %v1019, 76
    %v1026 = vpop.permute.xlu0 %1025
    %1027 = vrot.lane.b32.xlu0 %v1020, 76
    %v1028 = vpop.permute.xlu0 %1027
    %1029 = vrot.lane.b32.xlu0 %v1021, 76
    %v1030 = vpop.permute.xlu0 %1029
    %v1031 = vsel %vm422, %v1026, %v1028
    %v1032 = vsel %vm422, %v1028, %v1030
    %1035 = vst [vmem:[#allocation3 + $0xb0] sm:$0xff] %v1031
    %1036 = vst [vmem:[#allocation3 + $0xb8] sm:$0xff] %v1032
    %v1037 = vld [vmem:[#allocation2] sm:$0xff]
    %v1038 = vld [vmem:[#allocation2 + $0x8] sm:$0xff]
    %v1039 = vld [vmem:[#allocation2 + $0x10] sm:$0xff]
    %v1040 = vmul.f32 %v1037, %v433
    %v1041 = vmul.f32 %v1038, %v437
    %v1042 = vmul.f32 %v1039, %v435
    %1046 = vrot.lane.b32.xlu0 %v1040, 96
    %v1047 = vpop.permute.xlu0 %1046
    %1048 = vrot.lane.b32.xlu0 %v1041, 96
    %v1049 = vpop.permute.xlu0 %1048
    %1050 = vrot.lane.b32.xlu0 %v1042, 96
    %v1051 = vpop.permute.xlu0 %1050
    %v1052 = vsel %vm453, %v1047, %v1049
    %v1053 = vsel %vm453, %v1049, %v1051
    %1056 = vst [vmem:[#allocation3 + $0xc0] sm:$0xff] %v1052
    %1057 = vst [vmem:[#allocation3 + $0xc8] sm:$0xff] %v1053
    %v1058 = vld [vmem:[#allocation2 + $0x10] sm:$0xff]
    %v1059 = vld [vmem:[#allocation2 + $0x18] sm:$0xff]
    %v1060 = vld [vmem:[#allocation2 + $0x20] sm:$0xff]
    %v1061 = vmul.f32 %v1058, %v464
    %v1062 = vmul.f32 %v1059, %v468
    %v1063 = vmul.f32 %v1060, %v466
    %1067 = vrot.lane.b32.xlu0 %v1061, 62
    %v1068 = vpop.permute.xlu0 %1067
    %1069 = vrot.lane.b32.xlu0 %v1062, 62
    %v1070 = vpop.permute.xlu0 %1069
    %1071 = vrot.lane.b32.xlu0 %v1063, 62
    %v1072 = vpop.permute.xlu0 %1071
    %v1073 = vsel %vm484, %v1068, %v1070
    %v1074 = vsel %vm484, %v1070, %v1072
    %1077 = vst [vmem:[#allocation3 + $0xd0] sm:$0xff] %v1073
    %1078 = vst [vmem:[#allocation3 + $0xd8] sm:$0xff] %v1074
    %v1079 = vld [vmem:[#allocation2] sm:$0xff]
    %v1080 = vld [vmem:[#allocation2 + $0x8] sm:$0xff]
    %v1081 = vld [vmem:[#allocation2 + $0x10] sm:$0xff]
    %1085 = vrot.lane.b32.xlu0 %v1079, 95
    %v1086 = vpop.permute.xlu0 %1085
    %1087 = vrot.lane.b32.xlu0 %v1080, 95
    %v1088 = vpop.permute.xlu0 %1087
    %1089 = vrot.lane.b32.xlu0 %v1081, 95
    %v1090 = vpop.permute.xlu0 %1089
    %v1091 = vsel %vm503, %v1086, %v1088
    %v1092 = vsel %vm503, %v1088, %v1090
    %1095 = vst [vmem:[#allocation3 + $0xe0] sm:$0xff] %v1091
    %1096 = vst [vmem:[#allocation3 + $0xe8] sm:$0xff] %v1092
    %v1097 = vld [vmem:[#allocation2 + $0x10] sm:$0xff]
    %v1098 = vld [vmem:[#allocation2 + $0x18] sm:$0xff]
    %v1099 = vld [vmem:[#allocation2 + $0x20] sm:$0xff]
    %1103 = vrot.lane.b32.xlu0 %v1097, 61
    %v1104 = vpop.permute.xlu0 %1103
    %1105 = vrot.lane.b32.xlu0 %v1098, 61
    %v1106 = vpop.permute.xlu0 %1105
    %1107 = vrot.lane.b32.xlu0 %v1099, 61
    %v1108 = vpop.permute.xlu0 %1107
    %v1109 = vsel %vm522, %v1104, %v1106
    %v1110 = vsel %vm522, %v1106, %v1108
    %1113 = vst [vmem:[#allocation3 + $0xf0] sm:$0xff] %v1109
    %1114 = vst [vmem:[#allocation3 + $0xf8] sm:$0xff] %v1110
    %v1115 = vld [vmem:[#allocation2] sm:$0xff]
    %v1116 = vld [vmem:[#allocation2 + $0x8] sm:$0xff]
    %v1117 = vld [vmem:[#allocation2 + $0x10] sm:$0xff]
    %v1118 = vmul.f32 %v1115, %v533
    %v1119 = vmul.f32 %v1116, %v536
    %v1120 = vmul.f32 %v1117, %v535
    %1124 = vrot.lane.b32.xlu0 %v1118, 94
    %v1125 = vpop.permute.xlu0 %1124
    %1126 = vrot.lane.b32.xlu0 %v1119, 94
    %v1127 = vpop.permute.xlu0 %1126
    %1128 = vrot.lane.b32.xlu0 %v1120, 94
    %v1129 = vpop.permute.xlu0 %1128
    %v1130 = vsel %vm158, %v1125, %v1127
    %v1131 = vsel %vm158, %v1127, %v1129
    %1134 = vst [vmem:[#allocation3 + $0x100] sm:$0xff] %v1130
    %1135 = vst [vmem:[#allocation3 + $0x108] sm:$0xff] %v1131
    %v1136 = vld [vmem:[#allocation2 + $0x10] sm:$0xff]
    %v1137 = vld [vmem:[#allocation2 + $0x18] sm:$0xff]
    %v1138 = vld [vmem:[#allocation2 + $0x20] sm:$0xff]
    %v1139 = vmul.f32 %v1136, %v562
    %v1140 = vmul.f32 %v1137, %v566
    %v1141 = vmul.f32 %v1138, %v564
    %1145 = vrot.lane.b32.xlu0 %v1139, 60
    %v1146 = vpop.permute.xlu0 %1145
    %1147 = vrot.lane.b32.xlu0 %v1140, 60
    %v1148 = vpop.permute.xlu0 %1147
    %1149 = vrot.lane.b32.xlu0 %v1141, 60
    %v1150 = vpop.permute.xlu0 %1149
    %v1151 = vsel %vm582, %v1146, %v1148
    %v1152 = vsel %vm582, %v1148, %v1150
    %1155 = vst [vmem:[#allocation3 + $0x110] sm:$0xff] %v1151
    %1156 = vst [vmem:[#allocation3 + $0x118] sm:$0xff] %v1152
    %v1157 = vld [vmem:[%s3] sm:$0xf]
    %v1158 = vld [vmem:[#allocation3] sm:$0xff]
    %v1159 = vld [vmem:[#allocation3 + $0x8] sm:$0xff]
    %v1160 = vld [vmem:[#allocation3 + $0x10] sm:$0xff]
    %v1161 = vld [vmem:[#allocation3 + $0x18] sm:$0xff]
    %v1162 = vld [vmem:[#allocation3 + $0x20] sm:$0xff]
    %v1163 = vld [vmem:[#allocation3 + $0x28] sm:$0xff]
    %v1164 = vld [vmem:[#allocation3 + $0x30] sm:$0xff]
    %v1165 = vld [vmem:[#allocation3 + $0x38] sm:$0xff]
    %v1166 = vld [vmem:[#allocation3 + $0x40] sm:$0xff]
    %v1167 = vld [vmem:[#allocation3 + $0x48] sm:$0xff]
    %v1168 = vld [vmem:[#allocation3 + $0x50] sm:$0xff]
    %v1169 = vld [vmem:[#allocation3 + $0x58] sm:$0xff]
    %v1170 = vld [vmem:[#allocation3 + $0x60] sm:$0xff]
    %v1171 = vld [vmem:[#allocation3 + $0x68] sm:$0xff]
    %v1172 = vld [vmem:[#allocation3 + $0x70] sm:$0xff]
    %v1173 = vld [vmem:[#allocation3 + $0x78] sm:$0xff]
    %v1174 = vld [vmem:[#allocation3 + $0x80] sm:$0xff]
    %v1175 = vld [vmem:[#allocation3 + $0x88] sm:$0xff]
    %v1176 = vld [vmem:[#allocation3 + $0x90] sm:$0xff]
    %v1177 = vld [vmem:[#allocation3 + $0x98] sm:$0xff]
    %v1178 = vld [vmem:[#allocation3 + $0xa0] sm:$0xff]
    %v1179 = vld [vmem:[#allocation3 + $0xa8] sm:$0xff]
    %v1180 = vld [vmem:[#allocation3 + $0xb0] sm:$0xff]
    %v1181 = vld [vmem:[#allocation3 + $0xb8] sm:$0xff]
    %v1182 = vld [vmem:[#allocation3 + $0xc0] sm:$0xff]
    %v1183 = vld [vmem:[#allocation3 + $0xc8] sm:$0xff]
    %v1184 = vld [vmem:[#allocation3 + $0xd0] sm:$0xff]
    %v1185 = vld [vmem:[#allocation3 + $0xd8] sm:$0xff]
    %v1186 = vld [vmem:[#allocation3 + $0xe0] sm:$0xff]
    %v1187 = vld [vmem:[#allocation3 + $0xe8] sm:$0xff]
    %v1188 = vld [vmem:[#allocation3 + $0xf0] sm:$0xff]
    %v1189 = vld [vmem:[#allocation3 + $0xf8] sm:$0xff]
    %v1190 = vld [vmem:[#allocation3 + $0x100] sm:$0xff]
    %v1191 = vld [vmem:[#allocation3 + $0x108] sm:$0xff]
    %v1192 = vld [vmem:[#allocation3 + $0x110] sm:$0xff]
    %v1193 = vld [vmem:[#allocation3 + $0x118] sm:$0xff]
    %v1194 = vld [vmem:[%s4] sm:$0xf]
    %1196 = vset.pattern.permute.xlu0 0
    %1197 = vperm.xlu0 %1196, %v1194
    %v1198 = vpop.permute.xlu0 %1197
    %v1201 = vsel %vm632, %v1157, 0
    %1203 = vmatprep.subr.mxu0 %v1159
    %1204 = vmatpush1.msra.mxu0 %v1158
    %1205 = vmatprep.subr.mxu0 %v1163
    %1206 = vmatpush1.msra.mxu0 %v1162
    %1207 = vmatprep.subr.mxu0 %v1167
    %1208 = vmatpush1.msra.mxu0 %v1166
    %1209 = vmatprep.subr.mxu0 %v1171
    %1210 = vmatpush1.msra.mxu0 %v1170
    %1211 = vmatprep.subr.mxu0 %v1175
    %1212 = vmatpush1.msra.mxu0 %v1174
    %1213 = vmatprep.subr.mxu0 %v1179
    %1214 = vmatpush1.msra.mxu0 %v1178
    %1215 = vmatprep.subr.mxu0 %v1183
    %1216 = vmatpush1.msra.mxu0 %v1182
    %1217 = vmatprep.subr.mxu0 %v1187
    %1218 = vmatpush1.msra.mxu0 %v1186
    %1219 = vmatprep.subr.mxu0 %v1191
    %1220 = vmatpush1.msra.mxu0 %v1190
    %1221 = vmatprep.subr.mxu0 0.0
    %1222 = vmatpush1.msra.mxu0 0.0
    %1223 = vmatprep.subr.mxu0 0.0
    %1224 = vmatpush1.msra.mxu0 0.0
    %1225 = vmatprep.subr.mxu0 0.0
    %1226 = vmatpush1.msra.mxu0 0.0
    %1227 = vmatprep.subr.mxu0 0.0
    %1228 = vmatpush1.msra.mxu0 0.0
    %1229 = vmatprep.subr.mxu0 0.0
    %1230 = vmatpush1.msra.mxu0 0.0
    %1231 = vmatprep.subr.mxu0 0.0
    %1232 = vmatpush1.msra.mxu0 0.0
    %1233 = vmatprep.subr.mxu0 0.0
    %1234 = vmatpush1.msra.mxu0 0.0
    %1235 = vmatprep.subr.mxu0 0.0
    %1236 = vmatpush1.msra.mxu0 0.0
    %1237 = vmatprep.subr.mxu0 0.0
    %1238 = vmatpush1.msra.mxu0 0.0
    %1239 = vmatprep.subr.mxu0 0.0
    %1240 = vmatpush1.msra.mxu0 0.0
    %1241 = vmatprep.subr.mxu0 0.0
    %1242 = vmatpush1.msra.mxu0 0.0
    %1243 = vmatprep.subr.mxu0 0.0
    %1244 = vmatpush1.msra.mxu0 0.0
    %1245 = vmatprep.subr.mxu0 0.0
    %1246 = vmatpush1.msra.mxu0 0.0
    %1247 = vmatprep.subr.mxu0 0.0
    %1248 = vmatpush1.msra.mxu0 0.0
    %1249 = vmatprep.subr.mxu0 0.0
    %1250 = vmatpush1.msra.mxu0 0.0
    %1251 = vmatprep.subr.mxu0 0.0
    %1252 = vmatpush1.msra.mxu0 0.0
    %1253 = vmatprep.subr.mxu0 0.0
    %1254 = vmatpush1.msra.mxu0 0.0
    %1255 = vmatprep.subr.mxu0 0.0
    %1256 = vmatpush1.msra.mxu0 0.0
    %1257 = vmatprep.subr.mxu0 0.0
    %1258 = vmatpush1.msra.mxu0 0.0
    %1259 = vmatprep.subr.mxu0 0.0
    %1260 = vmatpush1.msra.mxu0 0.0
    %1261 = vmatprep.subr.mxu0 0.0
    %1262 = vmatpush1.msra.mxu0 0.0
    %1263 = vmatprep.subr.mxu0 0.0
    %1264 = vmatpush1.msra.mxu0 0.0
    %1265 = vmatprep.subr.mxu0 0.0
    %1266 = vmatpush1.msra.mxu0 0.0
    %1267 = vmatprep.mubr.f32.mxu0 0.0
    %1268 = vmatmul.mubr.f32.gmra.mrb[0].mxu0 %v1201
    %v1269 = vpop.f32.mrb[0].mxu0
    %v1270 = vadd.f32 %v1198, %v1269
    %v1271 = vpop.f32.mrb[0].mxu0
    %v1272 = vadd.f32 %v1198, %v1271
    %1273 = vdwg.mxu0
    %1274 = vmatprep.subr.mxu0 %v1161
    %1275 = vmatpush1.msra.mxu0 %v1160
    %1276 = vmatprep.subr.mxu0 %v1165
    %1277 = vmatpush1.msra.mxu0 %v1164
    %1278 = vmatprep.subr.mxu0 %v1169
    %1279 = vmatpush1.msra.mxu0 %v1168
    %1280 = vmatprep.subr.mxu0 %v1173
    %1281 = vmatpush1.msra.mxu0 %v1172
    %1282 = vmatprep.subr.mxu0 %v1177
    %1283 = vmatpush1.msra.mxu0 %v1176
    %1284 = vmatprep.subr.mxu0 %v1181
    %1285 = vmatpush1.msra.mxu0 %v1180
    %1286 = vmatprep.subr.mxu0 %v1185
    %1287 = vmatpush1.msra.mxu0 %v1184
    %1288 = vmatprep.subr.mxu0 %v1189
    %1289 = vmatpush1.msra.mxu0 %v1188
    %1290 = vmatprep.subr.mxu0 %v1193
    %1291 = vmatpush1.msra.mxu0 %v1192
    %1292 = vmatprep.subr.mxu0 0.0
    %1293 = vmatpush1.msra.mxu0 0.0
    %1294 = vmatprep.subr.mxu0 0.0
    %1295 = vmatpush1.msra.mxu0 0.0
    %1296 = vmatprep.subr.mxu0 0.0
    %1297 = vmatpush1.msra.mxu0 0.0
    %1298 = vmatprep.subr.mxu0 0.0
    %1299 = vmatpush1.msra.mxu0 0.0
    %1300 = vmatprep.subr.mxu0 0.0
    %1301 = vmatpush1.msra.mxu0 0.0
    %1302 = vmatprep.subr.mxu0 0.0
    %1303 = vmatpush1.msra.mxu0 0.0
    %1304 = vmatprep.subr.mxu0 0.0
    %1305 = vmatpush1.msra.mxu0 0.0
    %1306 = vmatprep.subr.mxu0 0.0
    %1307 = vmatpush1.msra.mxu0 0.0
    %1308 = vmatprep.subr.mxu0 0.0
    %1309 = vmatpush1.msra.mxu0 0.0
    %1310 = vmatprep.subr.mxu0 0.0
    %1311 = vmatpush1.msra.mxu0 0.0
    %1312 = vmatprep.subr.mxu0 0.0
    %1313 = vmatpush1.msra.mxu0 0.0
    %1314 = vmatprep.subr.mxu0 0.0
    %1315 = vmatpush1.msra.mxu0 0.0
    %1316 = vmatprep.subr.mxu0 0.0
    %1317 = vmatpush1.msra.mxu0 0.0
    %1318 = vmatprep.subr.mxu0 0.0
    %1319 = vmatpush1.msra.mxu0 0.0
    %1320 = vmatprep.subr.mxu0 0.0
    %1321 = vmatpush1.msra.mxu0 0.0
    %1322 = vmatprep.subr.mxu0 0.0
    %1323 = vmatpush1.msra.mxu0 0.0
    %1324 = vmatprep.subr.mxu0 0.0
    %1325 = vmatpush1.msra.mxu0 0.0
    %1326 = vmatprep.subr.mxu0 0.0
    %1327 = vmatpush1.msra.mxu0 0.0
    %1328 = vmatprep.subr.mxu0 0.0
    %1329 = vmatpush1.msra.mxu0 0.0
    %1330 = vmatprep.subr.mxu0 0.0
    %1331 = vmatpush1.msra.mxu0 0.0
    %1332 = vmatprep.subr.mxu0 0.0
    %1333 = vmatpush1.msra.mxu0 0.0
    %1334 = vmatprep.subr.mxu0 0.0
    %1335 = vmatpush1.msra.mxu0 0.0
    %1336 = vmatprep.subr.mxu0 0.0
    %1337 = vmatpush1.msra.mxu0 0.0
    %1338 = vmatprep.mubr.f32.mxu0 0.0
    %1339 = vmatmul.mubr.f32.gmra.mrb[0].mxu0 %v1201
    %v1340 = vpop.f32.mrb[0].mxu0
    %v1341 = vadd.f32 %v1198, %v1340
    %v1342 = vpop.f32.mrb[0].mxu0
    %v1343 = vadd.f32 %v1198, %v1342
    %1344 = vdwg.mxu0
    %v1347 = vcombine.low %v1270, %v1272
    %v1349 = vadd.f32 %v92, %v1347
    %v1350 = vmax.f32 %v1349, 0.0
    %1351 = vst [vmem:[#allocation7] sm:$0xff] %v1350
    %v1354 = vcombine.low %v1341, %v1343
    %v1356 = vadd.f32 %v94, %v1354
    %v1357 = vmax.f32 %v1356, 0.0
    %s1358 = scalar_lea.vmem [#allocation7], 8
    %1359 = vst [vmem:[%s1358] sm:$0xff] %v1357
    // Predicated region
    $region26: #{tpu_custom_call.1} parent=1 // pred_check
      _
    $region27: #{tpu_custom_call.1} parent=1 // pred_check_branch
      %1361 = sbr.rel (0) target = $region29
    $region28: #{tpu_custom_call.1} parent=1 // pred_region
      %s1363 = ssub.s32 256, 256
      %1364 = vsyncadd [#allocation6], %s1363
      %s1365 = sshll.u32 [#allocation7], 4
      %s1366 = int_to_ptr.vmem [resolvable:$true] %s1365
      %1371 = dma.vmem_to_hbm [thread:$0]  %s1366, 256, %s5, [#allocation6], 128, 128, 8
    $region29: #{tpu_custom_call.1} parent=1 // pred_fallthru
      _
    // Predicated region
    $region30: #{tpu_custom_call.1} parent=1 // pred_check
      _
    $region31: #{tpu_custom_call.1} parent=1 // pred_check_branch
      %1373 = sbr.rel (0) target = $region33
    $region32: #{tpu_custom_call.1} parent=1 // pred_region
      %1374 = dma.done [#allocation6], 256
    $region33: #{tpu_custom_call.1} parent=1 // pred_fallthru
      _
    %1375 = vsyncpa [#allocation5], 1
    %1376 = vsyncpa [#allocation6], 1

</llo_original>
